<compile_context>
chip_gen: v7x
topology: tpu7x:2x2x1
jax: 0.10.0
libtpu: 0.0.40
codegen_flags: <defaults>
</compile_context>

<pallas_src>
import functools

import jax
import jax.numpy as jnp
from jax import lax
from jax.experimental import pallas as pl
from jax.experimental.pallas import tpu as pltpu


def _self_attn_kernel(x_ref, wqt_ref, wk_ref, wv_ref, bq_ref, bk_ref, bv_ref,
                      g_ref, out_ref, attn_ref, k_sc, v_sc,
                      *, exp_in_bf16, approx_recip):
    """One (batch, query-tile) grid step.

    x_ref    : (1, C, N) f32   full slab for the current batch element
    wqt_ref  : (C, Cq)   bf16  Wq^T  (q comes out in (TQ, Cq) layout)
    wk_ref   : (Cq, C)   bf16
    wv_ref   : (C, C)    bf16
    bq_ref   : (1, Cq)   f32   (row bias for the (TQ, Cq) q)
    bk_ref   : (Cq, 1)   f32
    bv_ref   : (C, 1)    f32
    g_ref    : (1, 1)    f32   gamma, in SMEM
    out_ref  : (1, C, TQ)      output columns
    attn_ref : (1, TQ, N)      attention rows (lane-dense when N % 128 == 0)
    k_sc     : (Cq, N)   bf16  VMEM scratch (valid for the whole batch element)
    v_sc     : (C, N)    bf16  VMEM scratch (valid for the whole batch element)
    """
    qi = pl.program_id(1)
    tq = out_ref.shape[2]

    # Once per batch element (q-tile axis is innermost + "arbitrary"):
    # project K and V into bf16 VMEM scratch.
    @pl.when(qi == 0)
    def _():
        x_bf = x_ref[0].astype(jnp.bfloat16)                               # (C, N)
        k = jnp.dot(wk_ref[...], x_bf,
                    preferred_element_type=jnp.float32) + bk_ref[...]      # (Cq, N)
        v = jnp.dot(wv_ref[...], x_bf,
                    preferred_element_type=jnp.float32) + bv_ref[...]      # (C, N)
        k_sc[...] = k.astype(jnp.bfloat16)
        v_sc[...] = v.astype(jnp.bfloat16)

    # Query columns sliced from the resident slab: no second HBM read of x, and
    # the residual add below stays sourced from f32 data.
    col0 = pl.multiple_of(qi * tq, tq)
    xq = x_ref[0, :, pl.ds(col0, tq)]                                      # (C, TQ) f32

    # q directly in (TQ, Cq) layout (contract the C axes against Wq^T), so the
    # energy matmul is a standard (M,K)x(K,N) dot with no lhs relayout.
    q_t = lax.dot_general(xq.astype(jnp.bfloat16), wqt_ref[...],
                          (((0,), (0,)), ((), ())),
                          preferred_element_type=jnp.float32) + bq_ref[...]  # (TQ, Cq)

    energy = jnp.dot(q_t.astype(jnp.bfloat16), k_sc[...],
                     preferred_element_type=jnp.float32)                   # (TQ, N)

    # Numerically-stable row softmax (rows are independent -> no cross-tile state).
    m = jnp.max(energy, axis=-1, keepdims=True)
    z = energy - m
    if exp_in_bf16:
        # bf16 EUP (v6e / v7x): ~2x transcendental throughput; sums stay f32.
        p = jnp.exp(z.astype(jnp.bfloat16)).astype(jnp.float32)
    else:
        p = jnp.exp(z)
    denom = jnp.sum(p, axis=-1, keepdims=True)
    if approx_recip:
        # EUP approximate reciprocal: rows sum to 1 only approximately.
        attn = p * pl.reciprocal(denom, approx=True)
    else:
        attn = p / denom

    # One bf16 cast of attn, reused for both the MXU matmul and the store.
    attn_bf = attn.astype(jnp.bfloat16)

    # out[c, i] = sum_j v[c, j] * attn[i, j]  (== V @ attn^T)  -> (C, TQ)
    out = lax.dot_general(v_sc[...], attn_bf, (((1,), (1,)), ((), ())),
                          preferred_element_type=jnp.float32)

    gamma = g_ref[0, 0]
    out_ref[0] = (gamma * out + xq).astype(out_ref.dtype)
    if attn_ref.dtype == jnp.bfloat16:
        attn_ref[0] = attn_bf
    else:
        attn_ref[0] = attn.astype(attn_ref.dtype)


def _vmem_capacity_bytes():
    try:
        cap = getattr(pltpu.get_tpu_info(), "vmem_capacity_bytes", None)
        if cap:
            return int(cap)
    except Exception:
        pass
    return 64 * 2**20  # conservative default (v7x per-TensorCore VMEM)


def _bf16_eup_supported():
    """bf16 transcendentals exist on v6e / v7x, not on v5e and older."""
    try:
        kind = jax.devices()[0].device_kind.lower()
    except Exception:
        return False
    return any(tag in kind for tag in ("v6", "v7", "7x"))


def _pick_query_tile(n, vmem_cap_bytes):
    """Largest multiple-of-128 divisor of N that keeps the (TQ, N) f32 softmax
    slab around ~4 MiB on 64-MiB-VMEM parts (v7x) and ~8 MiB otherwise."""
    if n < 128 or n % 128 != 0:
        return n
    budget_bytes = 4 * 2**20 if vmem_cap_bytes <= 64 * 2**20 else 8 * 2**20
    budget_rows = max(128, budget_bytes // (4 * n))
    tq = 128
    while tq * 2 <= min(n, budget_rows) and n % (tq * 2) == 0:
        tq *= 2
    return tq


_SINGLE_BUFFER_OK = None  # lazily learned: does this jax accept pl.Buffered(1)?


def self_attn_multic(x, params, *, tq=None, attn_dtype=jnp.bfloat16,
                     approx_softmax_recip=True, bf16_exp=None):
    """x: (B, C, W, H) float32. Returns (out (B,C,W,H), attention (B,N,N)).

    attn_dtype defaults to bfloat16 (the (B,N,N) attention writeback dominates
    HBM traffic); pass jnp.float32 for a torch-matching dtype at 2x the bytes.
    """
    B, C, W, H = x.shape
    N = W * H
    Cq = params["wq"].shape[0]

    cap = _vmem_capacity_bytes()
    if tq is None:
        tq = _pick_query_tile(N, cap)
    assert N % tq == 0, "query tile must divide N"
    nq = N // tq

    x_flat = x.reshape(B, C, N)

    # Weights go to bf16 in the wrapper (half the DMA bytes, no in-kernel casts);
    # biases stay f32 (added to f32 accumulators). Wq is passed transposed so the
    # kernel produces q in (TQ, Cq) layout directly; bq becomes a (1, Cq) row.
    wqt = jnp.asarray(params["wq"]).T.astype(jnp.bfloat16)            # (C, Cq)
    wk = jnp.asarray(params["wk"]).astype(jnp.bfloat16)               # (Cq, C)
    wv = jnp.asarray(params["wv"]).astype(jnp.bfloat16)               # (C, C)
    bq_row = jnp.asarray(params["bq"]).reshape(1, Cq).astype(jnp.float32)
    bk = jnp.asarray(params["bk"]).astype(jnp.float32)
    bv = jnp.asarray(params["bv"]).astype(jnp.float32)
    gamma = jnp.asarray(params["gamma"]).reshape(1, 1).astype(jnp.float32)

    if bf16_exp is None:
        bf16_exp = _bf16_eup_supported()

    attn_bytes = jnp.dtype(attn_dtype).itemsize
    # VMEM residency estimate (x slab, out / attn blocks, f32 softmax
    # intermediates, bf16 K/V scratch), with headroom; clamped to capacity.
    est = (2 * C * N * 4                   # x slab (2x in case of double buffering)
           + 2 * C * tq * 4                # out column block
           + 2 * tq * N * attn_bytes       # attn output block
           + 3 * tq * N * 4                # energy / p / attn f32 live values
           + (Cq + C) * N * 2              # K / V bf16 scratch
           + (2 * Cq * C + C * C) * 2 + (2 * Cq + C) * 4)
    vmem_limit = int(min(cap - 4 * 2**20, max(32 * 2**20, int(1.5 * est))))
    vmem_limit = max(vmem_limit, 16 * 2**20)

    cost = pl.CostEstimate(
        flops=2 * B * N * (N * (C + Cq) + C * (C + 2 * Cq)),
        transcendentals=B * N * N,
        bytes_accessed=(2 * B * C * N * 4 + B * N * N * attn_bytes
                        + (2 * Cq * C + C * C) * 2 + (2 * Cq + C + 1) * 4),
    )

    kernel = functools.partial(_self_attn_kernel,
                               exp_in_bf16=bool(bf16_exp),
                               approx_recip=bool(approx_softmax_recip))

    def build_and_call(single_buffer_invariants):
        # Grid-invariant (or per-batch-only) operands don't benefit from the
        # default double buffering; single-buffer them to free VMEM.
        inv = ({"pipeline_mode": pl.Buffered(1)}
               if single_buffer_invariants else {})
        grid_spec = pltpu.PrefetchScalarGridSpec(
            num_scalar_prefetch=0,
            grid=(B, nq),
            in_specs=[
                # x: per-batch slab, resident across q tiles (K/V at qi==0,
                # sliced per tile for the Q projection and the residual add).
                pl.BlockSpec((1, C, N), lambda b, qi: (b, 0, 0), **inv),
                pl.BlockSpec((C, Cq), lambda b, qi: (0, 0), **inv),   # Wq^T
                pl.BlockSpec((Cq, C), lambda b, qi: (0, 0), **inv),   # Wk
                pl.BlockSpec((C, C), lambda b, qi: (0, 0), **inv),    # Wv
                pl.BlockSpec((1, Cq), lambda b, qi: (0, 0), **inv),   # bq (row)
                pl.BlockSpec((Cq, 1), lambda b, qi: (0, 0), **inv),   # bk
                pl.BlockSpec((C, 1), lambda b, qi: (0, 0), **inv),    # bv
                pl.BlockSpec(memory_space=pltpu.MemorySpace.SMEM),    # gamma
            ],
            out_specs=[
                pl.BlockSpec((1, C, tq), lambda b, qi: (b, 0, qi)),   # out cols
                pl.BlockSpec((1, tq, N), lambda b, qi: (b, qi, 0)),   # attn rows
            ],
            scratch_shapes=[
                pltpu.VMEM((Cq, N), jnp.bfloat16),   # K (per batch, bf16)
                pltpu.VMEM((C, N), jnp.bfloat16),    # V (per batch, bf16)
            ],
        )
        return pl.pallas_call(
            kernel,
            out_shape=(jax.ShapeDtypeStruct((B, C, N), x.dtype),
                       jax.ShapeDtypeStruct((B, N, N), attn_dtype)),
            grid_spec=grid_spec,
            compiler_params=pltpu.CompilerParams(
                dimension_semantics=("parallel", "arbitrary"),
                vmem_limit_bytes=vmem_limit),
            cost_estimate=cost,
        )(x_flat, wqt, wk, wv, bq_row, bk, bv, gamma)

    global _SINGLE_BUFFER_OK
    if _SINGLE_BUFFER_OK is None:
        try:
            out_flat, attn = build_and_call(True)
            _SINGLE_BUFFER_OK = True
        except Exception:
            # pl.Buffered(1) not accepted by this jax build: fall back to the
            # default double-buffering of the grid-invariant operands.
            _SINGLE_BUFFER_OK = False
            out_flat, attn = build_and_call(False)
    else:
        out_flat, attn = build_and_call(_SINGLE_BUFFER_OK)

    return out_flat.reshape(B, C, W, H), attn


def self_attn_multic_ref(x, params):
    """Pure-JAX reference mirroring the PyTorch forward, for validation."""
    B, C, W, H = x.shape
    N = W * H
    xf = x.reshape(B, C, N)
    q = jnp.einsum("qc,bcn->bqn", params["wq"], xf) + params["bq"][None]
    k = jnp.einsum("qc,bcn->bqn", params["wk"], xf) + params["bk"][None]
    v = jnp.einsum("oc,bcn->bon", params["wv"], xf) + params["bv"][None]
    energy = jnp.einsum("bqi,bqj->bij", q, k)
    attn = jax.nn.softmax(energy, axis=-1)
    out = jnp.einsum("bcj,bij->bci", v, attn)
    out = params["gamma"][0, 0] * out + xf
    return out.reshape(B, C, W, H), attn


def init_params(key, in_dim):
    """Deterministic init matching the module's parameter shapes.
    Conv2d(k=1) weight (Cout, Cin, 1, 1) is stored squeezed to (Cout, Cin);
    gamma is initialized to zero exactly as in the module."""
    cq = in_dim // 8
    k1, k2, k3, k4, k5, k6 = jax.random.split(key, 6)
    bound = 1.0 / jnp.sqrt(in_dim)
    return {
        "wq": jax.random.uniform(k1, (cq, in_dim), jnp.float32, -bound, bound),
        "wk": jax.random.uniform(k2, (cq, in_dim), jnp.float32, -bound, bound),
        "wv": jax.random.uniform(k3, (in_dim, in_dim), jnp.float32, -bound, bound),
        "bq": jax.random.uniform(k4, (cq, 1), jnp.float32, -bound, bound),
        "bk": jax.random.uniform(k5, (cq, 1), jnp.float32, -bound, bound),
        "bv": jax.random.uniform(k6, (in_dim, 1), jnp.float32, -bound, bound),
        "gamma": jnp.zeros((1, 1), jnp.float32),  # nn.Parameter(torch.zeros(1))
    }


if __name__ == "__main__":
    key = jax.random.PRNGKey(0)
    kx, kp = jax.random.split(key)

    # in_dim must be >= 8 so that in_dim // 8 >= 1 (as in the PyTorch module).
    B, C, W, H = 2, 16, 16, 16          # N = 256, Cq = 2
    x = jax.random.normal(kx, (B, C, W, H), dtype=jnp.float32)
    params = init_params(kp, C)

    out_ref, attn_ref = self_attn_multic_ref(x, params)

    # Default config: bf16 attention writeback, tq=128 -> 2 query tiles / batch.
    out, attn = self_attn_multic(x, params, tq=128)
    out, attn = jax.block_until_ready((out, attn))
    assert out.shape == (B, C, W, H) and attn.shape == (B, W * H, W * H)
    assert attn.dtype == jnp.bfloat16
    # bf16 MXU operands / attn storage + approx reciprocal -> loose tolerances.
    assert jnp.allclose(out, out_ref, atol=5e-2, rtol=5e-2)
    assert jnp.allclose(attn.astype(jnp.float32), attn_ref, atol=5e-3, rtol=5e-2)

    # gamma is 0 at init (as in the module); a non-zero gamma exercises the
    # attention-weighted output path.
    params_g = dict(params, gamma=jnp.full((1, 1), 0.5, jnp.float32))
    out2, attn2 = jax.block_until_ready(self_attn_multic(x, params_g, tq=128))
    out2_ref, _ = self_attn_multic_ref(x, params_g)
    assert jnp.allclose(out2, out2_ref, atol=5e-2, rtol=5e-2)

    # f32 attention opt-in + auto tile selection (single query tile) path.
    out3, attn3 = jax.block_until_ready(
        self_attn_multic(x, params_g, attn_dtype=jnp.float32))
    assert attn3.dtype == jnp.float32
    assert jnp.allclose(attn3, attn_ref, atol=5e-3, rtol=5e-2)
    assert jnp.allclose(out3, out2_ref, atol=5e-2, rtol=5e-2)

    print("KERNEL_OK")
</pallas_src>

<mosaic_0001>
module attributes {stable_mosaic.version = 11 : i64} {
  func.func @_self_attn_kernel(%arg0: i32, %arg1: i32, %arg2: memref<1x16x256xf32, #tpu.memory_space<vmem>>, %arg3: memref<16x2xbf16, #tpu.memory_space<vmem>>, %arg4: memref<2x16xbf16, #tpu.memory_space<vmem>>, %arg5: memref<16x16xbf16, #tpu.memory_space<vmem>>, %arg6: memref<1x2xf32, #tpu.memory_space<vmem>>, %arg7: memref<2x1xf32, #tpu.memory_space<vmem>>, %arg8: memref<16x1xf32, #tpu.memory_space<vmem>>, %arg9: memref<1x1xf32, #tpu.memory_space<smem>>, %arg10: memref<1x16x128xf32, #tpu.memory_space<vmem>>, %arg11: memref<1x128x256xbf16, #tpu.memory_space<vmem>>, %arg12: memref<2x256xbf16, #tpu.memory_space<vmem>>, %arg13: memref<16x256xbf16, #tpu.memory_space<vmem>>) attributes {dimension_semantics = [#tpu.dimension_semantics<parallel>, #tpu.dimension_semantics<arbitrary>], iteration_bounds = array<i64: 2, 2>, scalar_prefetch = 0 : i64, scratch_operands = 2 : i64, tpu.core_type = #tpu.core_type<tc>, window_params = [{pipeline_mode = #tpu.pipeline_mode<synchronous>, transform_indices = @transform_0, window_bounds = array<i64: 1, 16, 256>}, {pipeline_mode = #tpu.pipeline_mode<synchronous>, transform_indices = @transform_1, window_bounds = array<i64: 16, 2>}, {pipeline_mode = #tpu.pipeline_mode<synchronous>, transform_indices = @transform_2, window_bounds = array<i64: 2, 16>}, {pipeline_mode = #tpu.pipeline_mode<synchronous>, transform_indices = @transform_3, window_bounds = array<i64: 16, 16>}, {pipeline_mode = #tpu.pipeline_mode<synchronous>, transform_indices = @transform_4, window_bounds = array<i64: 1, 2>}, {pipeline_mode = #tpu.pipeline_mode<synchronous>, transform_indices = @transform_5, window_bounds = array<i64: 2, 1>}, {pipeline_mode = #tpu.pipeline_mode<synchronous>, transform_indices = @transform_6, window_bounds = array<i64: 16, 1>}, {transform_indices = @transform_7, window_bounds = array<i64: 1, 1>}, {transform_indices = @transform_8, window_bounds = array<i64: 1, 16, 128>}, {transform_indices = @transform_9, window_bounds = array<i64: 1, 128, 256>}]} {
    %c0_i32 = arith.constant 0 : i32
    %0 = arith.cmpi eq, %arg1, %c0_i32 : i32
    %1 = arith.extui %0 : i1 to i32
    %c0_i32_0 = arith.constant 0 : i32
    %2 = arith.cmpi ne, %1, %c0_i32_0 : i32
    scf.if %2 {
      %c0_22 = arith.constant 0 : index
      %c0_23 = arith.constant 0 : index
      %c0_24 = arith.constant 0 : index
      %40 = vector.load %arg2[%c0_22, %c0_23, %c0_24] : memref<1x16x256xf32, #tpu.memory_space<vmem>>, vector<1x16x256xf32>
      %41 = vector.shape_cast %40 : vector<1x16x256xf32> to vector<16x256xf32>
      %42 = arith.truncf %41 : vector<16x256xf32> to vector<16x256xbf16>
      %c0_25 = arith.constant 0 : index
      %c0_26 = arith.constant 0 : index
      %43 = vector.load %arg4[%c0_25, %c0_26] : memref<2x16xbf16, #tpu.memory_space<vmem>>, vector<2x16xbf16>
      %cst_27 = arith.constant dense<0.000000e+00> : vector<2x256xf32>
      %44 = tpu.matmul %43, %42, %cst_27 {dimension_numbers = #tpu.dot_dimension_numbers<[1], [0], [0], [1], [0, 0, 1, 1], [], []>} : vector<2x16xbf16>, vector<16x256xbf16>, vector<2x256xf32> -> vector<2x256xf32>
      %c0_28 = arith.constant 0 : index
      %c0_29 = arith.constant 0 : index
      %45 = vector.load %arg7[%c0_28, %c0_29] : memref<2x1xf32, #tpu.memory_space<vmem>>, vector<2x1xf32>
      %46 = vector.broadcast %45 : vector<2x1xf32> to vector<2x256xf32>
      %47 = arith.addf %44, %46 : vector<2x256xf32>
      %c0_30 = arith.constant 0 : index
      %c0_31 = arith.constant 0 : index
      %48 = vector.load %arg5[%c0_30, %c0_31] : memref<16x16xbf16, #tpu.memory_space<vmem>>, vector<16x16xbf16>
      %cst_32 = arith.constant dense<0.000000e+00> : vector<16x256xf32>
      %49 = tpu.matmul %48, %42, %cst_32 {dimension_numbers = #tpu.dot_dimension_numbers<[1], [0], [0], [1], [0, 0, 1, 1], [], []>} : vector<16x16xbf16>, vector<16x256xbf16>, vector<16x256xf32> -> vector<16x256xf32>
      %c0_33 = arith.constant 0 : index
      %c0_34 = arith.constant 0 : index
      %50 = vector.load %arg8[%c0_33, %c0_34] : memref<16x1xf32, #tpu.memory_space<vmem>>, vector<16x1xf32>
      %51 = vector.broadcast %50 : vector<16x1xf32> to vector<16x256xf32>
      %52 = arith.addf %49, %51 : vector<16x256xf32>
      %53 = arith.truncf %47 : vector<2x256xf32> to vector<2x256xbf16>
      %c0_35 = arith.constant 0 : index
      %c0_36 = arith.constant 0 : index
      %54 = vector.load %arg12[%c0_35, %c0_36] : memref<2x256xbf16, #tpu.memory_space<vmem>>, vector<2x256xbf16>
      tpu.vector_store %arg12[%c0_35, %c0_36], %53 {strides = array<i32>} : memref<2x256xbf16, #tpu.memory_space<vmem>>, vector<2x256xbf16>,
      %55 = arith.truncf %52 : vector<16x256xf32> to vector<16x256xbf16>
      %c0_37 = arith.constant 0 : index
      %c0_38 = arith.constant 0 : index
      %56 = vector.load %arg13[%c0_37, %c0_38] : memref<16x256xbf16, #tpu.memory_space<vmem>>, vector<16x256xbf16>
      tpu.vector_store %arg13[%c0_37, %c0_38], %55 {strides = array<i32>} : memref<16x256xbf16, #tpu.memory_space<vmem>>, vector<16x256xbf16>,
    } else {
    }
    %c128_i32 = arith.constant 128 : i32
    %3 = arith.muli %arg1, %c128_i32 : i32
    %4 = tpu.assume_multiple %3, 128 : i32
    %c0 = arith.constant 0 : index
    %c0_1 = arith.constant 0 : index
    %5 = arith.index_cast %4 : i32 to index
    %6 = vector.load %arg2[%c0, %c0_1, %5] : memref<1x16x256xf32, #tpu.memory_space<vmem>>, vector<1x16x128xf32>
    %7 = vector.shape_cast %6 : vector<1x16x128xf32> to vector<16x128xf32>
    %8 = arith.truncf %7 : vector<16x128xf32> to vector<16x128xbf16>
    %c0_2 = arith.constant 0 : index
    %c0_3 = arith.constant 0 : index
    %9 = vector.load %arg3[%c0_2, %c0_3] : memref<16x2xbf16, #tpu.memory_space<vmem>>, vector<16x2xbf16>
    %cst = arith.constant dense<0.000000e+00> : vector<128x2xf32>
    %10 = tpu.matmul %8, %9, %cst {dimension_numbers = #tpu.dot_dimension_numbers<[0], [0], [1], [1], [0, 1, 1, 1], [], []>} : vector<16x128xbf16>, vector<16x2xbf16>, vector<128x2xf32> -> vector<128x2xf32>
    %c0_4 = arith.constant 0 : index
    %c0_5 = arith.constant 0 : index
    %11 = vector.load %arg6[%c0_4, %c0_5] : memref<1x2xf32, #tpu.memory_space<vmem>>, vector<1x2xf32>
    %12 = vector.broadcast %11 : vector<1x2xf32> to vector<128x2xf32>
    %13 = arith.addf %10, %12 : vector<128x2xf32>
    %14 = arith.truncf %13 : vector<128x2xf32> to vector<128x2xbf16>
    %c0_6 = arith.constant 0 : index
    %c0_7 = arith.constant 0 : index
    %15 = vector.load %arg12[%c0_6, %c0_7] : memref<2x256xbf16, #tpu.memory_space<vmem>>, vector<2x256xbf16>
    %cst_8 = arith.constant dense<0.000000e+00> : vector<128x256xf32>
    %16 = tpu.matmul %14, %15, %cst_8 {dimension_numbers = #tpu.dot_dimension_numbers<[1], [0], [0], [1], [0, 0, 1, 1], [], []>} : vector<128x2xbf16>, vector<2x256xbf16>, vector<128x256xf32> -> vector<128x256xf32>
    %cst_9 = arith.constant dense<0xFF800000> : vector<128xf32>
    %17 = vector.multi_reduction <maximumf>, %16, %cst_9 [1] : vector<128x256xf32> to vector<128xf32>
    %18 = vector.shape_cast %17 : vector<128xf32> to vector<128x1xf32>
    %19 = vector.broadcast %18 : vector<128x1xf32> to vector<128x256xf32>
    %20 = arith.subf %16, %19 : vector<128x256xf32>
    %21 = math.exp %20 : vector<128x256xf32>
    %cst_10 = arith.constant dense<0.000000e+00> : vector<128xf32>
    %22 = vector.multi_reduction <add>, %21, %cst_10 [1] : vector<128x256xf32> to vector<128xf32>
    %23 = vector.shape_cast %22 : vector<128xf32> to vector<128x1xf32>
    %24 = tpu.reciprocal %23 {approx = true} : vector<128x1xf32> -> vector<128x1xf32>
    %25 = vector.broadcast %24 : vector<128x1xf32> to vector<128x256xf32>
    %26 = arith.mulf %21, %25 : vector<128x256xf32>
    %27 = arith.truncf %26 : vector<128x256xf32> to vector<128x256xbf16>
    %c0_11 = arith.constant 0 : index
    %c0_12 = arith.constant 0 : index
    %28 = vector.load %arg13[%c0_11, %c0_12] : memref<16x256xbf16, #tpu.memory_space<vmem>>, vector<16x256xbf16>
    %cst_13 = arith.constant dense<0.000000e+00> : vector<16x128xf32>
    %29 = tpu.matmul %28, %27, %cst_13 {dimension_numbers = #tpu.dot_dimension_numbers<[1], [1], [0], [0], [0, 0, 1, 0], [], []>} : vector<16x256xbf16>, vector<128x256xbf16>, vector<16x128xf32> -> vector<16x128xf32>
    %c0_14 = arith.constant 0 : index
    %c0_15 = arith.constant 0 : index
    %30 = memref.load %arg9[%c0_14, %c0_15] : memref<1x1xf32, #tpu.memory_space<smem>>
    %31 = vector.broadcast %30 : f32 to vector<16x128xf32>
    %32 = arith.mulf %31, %29 : vector<16x128xf32>
    %33 = arith.addf %32, %7 : vector<16x128xf32>
    %c0_16 = arith.constant 0 : index
    %c0_17 = arith.constant 0 : index
    %c0_18 = arith.constant 0 : index
    %34 = vector.load %arg10[%c0_16, %c0_17, %c0_18] : memref<1x16x128xf32, #tpu.memory_space<vmem>>, vector<1x16x128xf32>
    %35 = vector.shape_cast %34 : vector<1x16x128xf32> to vector<16x128xf32>
    %36 = vector.shape_cast %33 : vector<16x128xf32> to vector<1x16x128xf32>
    tpu.vector_store %arg10[%c0_16, %c0_17, %c0_18], %36 {strides = array<i32>} : memref<1x16x128xf32, #tpu.memory_space<vmem>>, vector<1x16x128xf32>,
    %c0_19 = arith.constant 0 : index
    %c0_20 = arith.constant 0 : index
    %c0_21 = arith.constant 0 : index
    %37 = vector.load %arg11[%c0_19, %c0_20, %c0_21] : memref<1x128x256xbf16, #tpu.memory_space<vmem>>, vector<1x128x256xbf16>
    %38 = vector.shape_cast %37 : vector<1x128x256xbf16> to vector<128x256xbf16>
    %39 = vector.shape_cast %27 : vector<128x256xbf16> to vector<1x128x256xbf16>
    tpu.vector_store %arg11[%c0_19, %c0_20, %c0_21], %39 {strides = array<i32>} : memref<1x128x256xbf16, #tpu.memory_space<vmem>>, vector<1x128x256xbf16>,
    return
  }
  func.func @transform_0(%arg0: i32, %arg1: i32) -> (i32, i32, i32) {
    %c0_i32 = arith.constant 0 : i32
    %c0_i32_0 = arith.constant 0 : i32
    %c0_i32_1 = arith.constant 0 : i32
    return %arg0, %c0_i32, %c0_i32_0 : i32, i32, i32
  }
  func.func @transform_1(%arg0: i32, %arg1: i32) -> (i32, i32) {
    %c0_i32 = arith.constant 0 : i32
    %c0_i32_0 = arith.constant 0 : i32
    %c0_i32_1 = arith.constant 0 : i32
    return %c0_i32, %c0_i32_0 : i32, i32
  }
  func.func @transform_2(%arg0: i32, %arg1: i32) -> (i32, i32) {
    %c0_i32 = arith.constant 0 : i32
    %c0_i32_0 = arith.constant 0 : i32
    %c0_i32_1 = arith.constant 0 : i32
    return %c0_i32, %c0_i32_0 : i32, i32
  }
  func.func @transform_3(%arg0: i32, %arg1: i32) -> (i32, i32) {
    %c0_i32 = arith.constant 0 : i32
    %c0_i32_0 = arith.constant 0 : i32
    %c0_i32_1 = arith.constant 0 : i32
    return %c0_i32, %c0_i32_0 : i32, i32
  }
  func.func @transform_4(%arg0: i32, %arg1: i32) -> (i32, i32) {
    %c0_i32 = arith.constant 0 : i32
    %c0_i32_0 = arith.constant 0 : i32
    %c0_i32_1 = arith.constant 0 : i32
    return %c0_i32, %c0_i32_0 : i32, i32
  }
  func.func @transform_5(%arg0: i32, %arg1: i32) -> (i32, i32) {
    %c0_i32 = arith.constant 0 : i32
    %c0_i32_0 = arith.constant 0 : i32
    %c0_i32_1 = arith.constant 0 : i32
    return %c0_i32, %c0_i32_0 : i32, i32
  }
  func.func @transform_6(%arg0: i32, %arg1: i32) -> (i32, i32) {
    %c0_i32 = arith.constant 0 : i32
    %c0_i32_0 = arith.constant 0 : i32
    %c0_i32_1 = arith.constant 0 : i32
    return %c0_i32, %c0_i32_0 : i32, i32
  }
  func.func @transform_7(%arg0: i32, %arg1: i32) -> (i32, i32) {
    %c0_i32 = arith.constant 0 : i32
    %c0_i32_0 = arith.constant 0 : i32
    %c0_i32_1 = arith.constant 0 : i32
    return %c0_i32, %c0_i32_0 : i32, i32
  }
  func.func @transform_8(%arg0: i32, %arg1: i32) -> (i32, i32, i32) {
    %c0_i32 = arith.constant 0 : i32
    %c0_i32_0 = arith.constant 0 : i32
    return %arg0, %c0_i32, %arg1 : i32, i32, i32
  }
  func.func @transform_9(%arg0: i32, %arg1: i32) -> (i32, i32, i32) {
    %c0_i32 = arith.constant 0 : i32
    %c0_i32_0 = arith.constant 0 : i32
    return %arg0, %arg1, %c0_i32 : i32, i32, i32
  }
}

module attributes {stable_mosaic.version = 11 : i64} {
  func.func @_self_attn_kernel(%arg0: i32, %arg1: i32, %arg2: memref<1x16x256xf32, #tpu.memory_space<vmem>>, %arg3: memref<16x2xbf16, #tpu.memory_space<vmem>>, %arg4: memref<2x16xbf16, #tpu.memory_space<vmem>>, %arg5: memref<16x16xbf16, #tpu.memory_space<vmem>>, %arg6: memref<1x2xf32, #tpu.memory_space<vmem>>, %arg7: memref<2x1xf32, #tpu.memory_space<vmem>>, %arg8: memref<16x1xf32, #tpu.memory_space<vmem>>, %arg9: memref<1x1xf32, #tpu.memory_space<smem>>, %arg10: memref<1x16x128xf32, #tpu.memory_space<vmem>>, %arg11: memref<1x128x256xbf16, #tpu.memory_space<vmem>>, %arg12: memref<2x256xbf16, #tpu.memory_space<vmem>>, %arg13: memref<16x256xbf16, #tpu.memory_space<vmem>>) attributes {dimension_semantics = [#tpu.dimension_semantics<parallel>, #tpu.dimension_semantics<arbitrary>], iteration_bounds = array<i64: 2, 2>, scalar_prefetch = 0 : i64, scratch_operands = 2 : i64, tpu.core_type = #tpu.core_type<tc>, window_params = [{transform_indices = @transform_0, window_bounds = array<i64: 1, 16, 256>}, {pipeline_mode = #tpu.pipeline_mode<synchronous>, transform_indices = @transform_1, window_bounds = array<i64: 16, 2>}, {pipeline_mode = #tpu.pipeline_mode<synchronous>, transform_indices = @transform_2, window_bounds = array<i64: 2, 16>}, {pipeline_mode = #tpu.pipeline_mode<synchronous>, transform_indices = @transform_3, window_bounds = array<i64: 16, 16>}, {pipeline_mode = #tpu.pipeline_mode<synchronous>, transform_indices = @transform_4, window_bounds = array<i64: 1, 2>}, {pipeline_mode = #tpu.pipeline_mode<synchronous>, transform_indices = @transform_5, window_bounds = array<i64: 2, 1>}, {pipeline_mode = #tpu.pipeline_mode<synchronous>, transform_indices = @transform_6, window_bounds = array<i64: 16, 1>}, {transform_indices = @transform_7, window_bounds = array<i64: 1, 1>}, {transform_indices = @transform_8, window_bounds = array<i64: 1, 16, 128>}, {transform_indices = @transform_9, window_bounds = array<i64: 1, 128, 256>}]} {
    %c0_i32 = arith.constant 0 : i32
    %0 = arith.cmpi eq, %arg1, %c0_i32 : i32
    %1 = arith.extui %0 : i1 to i32
    %c0_i32_0 = arith.constant 0 : i32
    %2 = arith.cmpi ne, %1, %c0_i32_0 : i32
    scf.if %2 {
      %c0_22 = arith.constant 0 : index
      %c0_23 = arith.constant 0 : index
      %c0_24 = arith.constant 0 : index
      %40 = vector.load %arg2[%c0_22, %c0_23, %c0_24] : memref<1x16x256xf32, #tpu.memory_space<vmem>>, vector<1x16x256xf32>
      %41 = vector.shape_cast %40 : vector<1x16x256xf32> to vector<16x256xf32>
      %42 = arith.truncf %41 : vector<16x256xf32> to vector<16x256xbf16>
      %c0_25 = arith.constant 0 : index
      %c0_26 = arith.constant 0 : index
      %43 = vector.load %arg4[%c0_25, %c0_26] : memref<2x16xbf16, #tpu.memory_space<vmem>>, vector<2x16xbf16>
      %cst_27 = arith.constant dense<0.000000e+00> : vector<2x256xf32>
      %44 = tpu.matmul %43, %42, %cst_27 {dimension_numbers = #tpu.dot_dimension_numbers<[1], [0], [0], [1], [0, 0, 1, 1], [], []>} : vector<2x16xbf16>, vector<16x256xbf16>, vector<2x256xf32> -> vector<2x256xf32>
      %c0_28 = arith.constant 0 : index
      %c0_29 = arith.constant 0 : index
      %45 = vector.load %arg7[%c0_28, %c0_29] : memref<2x1xf32, #tpu.memory_space<vmem>>, vector<2x1xf32>
      %46 = vector.broadcast %45 : vector<2x1xf32> to vector<2x256xf32>
      %47 = arith.addf %44, %46 : vector<2x256xf32>
      %c0_30 = arith.constant 0 : index
      %c0_31 = arith.constant 0 : index
      %48 = vector.load %arg5[%c0_30, %c0_31] : memref<16x16xbf16, #tpu.memory_space<vmem>>, vector<16x16xbf16>
      %cst_32 = arith.constant dense<0.000000e+00> : vector<16x256xf32>
      %49 = tpu.matmul %48, %42, %cst_32 {dimension_numbers = #tpu.dot_dimension_numbers<[1], [0], [0], [1], [0, 0, 1, 1], [], []>} : vector<16x16xbf16>, vector<16x256xbf16>, vector<16x256xf32> -> vector<16x256xf32>
      %c0_33 = arith.constant 0 : index
      %c0_34 = arith.constant 0 : index
      %50 = vector.load %arg8[%c0_33, %c0_34] : memref<16x1xf32, #tpu.memory_space<vmem>>, vector<16x1xf32>
      %51 = vector.broadcast %50 : vector<16x1xf32> to vector<16x256xf32>
      %52 = arith.addf %49, %51 : vector<16x256xf32>
      %53 = arith.truncf %47 : vector<2x256xf32> to vector<2x256xbf16>
      %c0_35 = arith.constant 0 : index
      %c0_36 = arith.constant 0 : index
      %54 = vector.load %arg12[%c0_35, %c0_36] : memref<2x256xbf16, #tpu.memory_space<vmem>>, vector<2x256xbf16>
      tpu.vector_store %arg12[%c0_35, %c0_36], %53 {strides = array<i32>} : memref<2x256xbf16, #tpu.memory_space<vmem>>, vector<2x256xbf16>,
      %55 = arith.truncf %52 : vector<16x256xf32> to vector<16x256xbf16>
      %c0_37 = arith.constant 0 : index
      %c0_38 = arith.constant 0 : index
      %56 = vector.load %arg13[%c0_37, %c0_38] : memref<16x256xbf16, #tpu.memory_space<vmem>>, vector<16x256xbf16>
      tpu.vector_store %arg13[%c0_37, %c0_38], %55 {strides = array<i32>} : memref<16x256xbf16, #tpu.memory_space<vmem>>, vector<16x256xbf16>,
    } else {
    }
    %c128_i32 = arith.constant 128 : i32
    %3 = arith.muli %arg1, %c128_i32 : i32
    %4 = tpu.assume_multiple %3, 128 : i32
    %c0 = arith.constant 0 : index
    %c0_1 = arith.constant 0 : index
    %5 = arith.index_cast %4 : i32 to index
    %6 = vector.load %arg2[%c0, %c0_1, %5] : memref<1x16x256xf32, #tpu.memory_space<vmem>>, vector<1x16x128xf32>
    %7 = vector.shape_cast %6 : vector<1x16x128xf32> to vector<16x128xf32>
    %8 = arith.truncf %7 : vector<16x128xf32> to vector<16x128xbf16>
    %c0_2 = arith.constant 0 : index
    %c0_3 = arith.constant 0 : index
    %9 = vector.load %arg3[%c0_2, %c0_3] : memref<16x2xbf16, #tpu.memory_space<vmem>>, vector<16x2xbf16>
    %cst = arith.constant dense<0.000000e+00> : vector<128x2xf32>
    %10 = tpu.matmul %8, %9, %cst {dimension_numbers = #tpu.dot_dimension_numbers<[0], [0], [1], [1], [0, 1, 1, 1], [], []>} : vector<16x128xbf16>, vector<16x2xbf16>, vector<128x2xf32> -> vector<128x2xf32>
    %c0_4 = arith.constant 0 : index
    %c0_5 = arith.constant 0 : index
    %11 = vector.load %arg6[%c0_4, %c0_5] : memref<1x2xf32, #tpu.memory_space<vmem>>, vector<1x2xf32>
    %12 = vector.broadcast %11 : vector<1x2xf32> to vector<128x2xf32>
    %13 = arith.addf %10, %12 : vector<128x2xf32>
    %14 = arith.truncf %13 : vector<128x2xf32> to vector<128x2xbf16>
    %c0_6 = arith.constant 0 : index
    %c0_7 = arith.constant 0 : index
    %15 = vector.load %arg12[%c0_6, %c0_7] : memref<2x256xbf16, #tpu.memory_space<vmem>>, vector<2x256xbf16>
    %cst_8 = arith.constant dense<0.000000e+00> : vector<128x256xf32>
    %16 = tpu.matmul %14, %15, %cst_8 {dimension_numbers = #tpu.dot_dimension_numbers<[1], [0], [0], [1], [0, 0, 1, 1], [], []>} : vector<128x2xbf16>, vector<2x256xbf16>, vector<128x256xf32> -> vector<128x256xf32>
    %cst_9 = arith.constant dense<0xFF800000> : vector<128xf32>
    %17 = vector.multi_reduction <maximumf>, %16, %cst_9 [1] : vector<128x256xf32> to vector<128xf32>
    %18 = vector.shape_cast %17 : vector<128xf32> to vector<128x1xf32>
    %19 = vector.broadcast %18 : vector<128x1xf32> to vector<128x256xf32>
    %20 = arith.subf %16, %19 : vector<128x256xf32>
    %21 = math.exp %20 : vector<128x256xf32>
    %cst_10 = arith.constant dense<0.000000e+00> : vector<128xf32>
    %22 = vector.multi_reduction <add>, %21, %cst_10 [1] : vector<128x256xf32> to vector<128xf32>
    %23 = vector.shape_cast %22 : vector<128xf32> to vector<128x1xf32>
    %24 = tpu.reciprocal %23 {approx = true} : vector<128x1xf32> -> vector<128x1xf32>
    %25 = vector.broadcast %24 : vector<128x1xf32> to vector<128x256xf32>
    %26 = arith.mulf %21, %25 : vector<128x256xf32>
    %27 = arith.truncf %26 : vector<128x256xf32> to vector<128x256xbf16>
    %c0_11 = arith.constant 0 : index
    %c0_12 = arith.constant 0 : index
    %28 = vector.load %arg13[%c0_11, %c0_12] : memref<16x256xbf16, #tpu.memory_space<vmem>>, vector<16x256xbf16>
    %cst_13 = arith.constant dense<0.000000e+00> : vector<16x128xf32>
    %29 = tpu.matmul %28, %27, %cst_13 {dimension_numbers = #tpu.dot_dimension_numbers<[1], [1], [0], [0], [0, 0, 1, 0], [], []>} : vector<16x256xbf16>, vector<128x256xbf16>, vector<16x128xf32> -> vector<16x128xf32>
    %c0_14 = arith.constant 0 : index
    %c0_15 = arith.constant 0 : index
    %30 = memref.load %arg9[%c0_14, %c0_15] : memref<1x1xf32, #tpu.memory_space<smem>>
    %31 = vector.broadcast %30 : f32 to vector<16x128xf32>
    %32 = arith.mulf %31, %29 : vector<16x128xf32>
    %33 = arith.addf %32, %7 : vector<16x128xf32>
    %c0_16 = arith.constant 0 : index
    %c0_17 = arith.constant 0 : index
    %c0_18 = arith.constant 0 : index
    %34 = vector.load %arg10[%c0_16, %c0_17, %c0_18] : memref<1x16x128xf32, #tpu.memory_space<vmem>>, vector<1x16x128xf32>
    %35 = vector.shape_cast %34 : vector<1x16x128xf32> to vector<16x128xf32>
    %36 = vector.shape_cast %33 : vector<16x128xf32> to vector<1x16x128xf32>
    tpu.vector_store %arg10[%c0_16, %c0_17, %c0_18], %36 {strides = array<i32>} : memref<1x16x128xf32, #tpu.memory_space<vmem>>, vector<1x16x128xf32>,
    %c0_19 = arith.constant 0 : index
    %c0_20 = arith.constant 0 : index
    %c0_21 = arith.constant 0 : index
    %37 = vector.load %arg11[%c0_19, %c0_20, %c0_21] : memref<1x128x256xbf16, #tpu.memory_space<vmem>>, vector<1x128x256xbf16>
    %38 = vector.shape_cast %37 : vector<1x128x256xbf16> to vector<128x256xbf16>
    %39 = vector.shape_cast %27 : vector<128x256xbf16> to vector<1x128x256xbf16>
    tpu.vector_store %arg11[%c0_19, %c0_20, %c0_21], %39 {strides = array<i32>} : memref<1x128x256xbf16, #tpu.memory_space<vmem>>, vector<1x128x256xbf16>,
    return
  }
  func.func @transform_0(%arg0: i32, %arg1: i32) -> (i32, i32, i32) {
    %c0_i32 = arith.constant 0 : i32
    %c0_i32_0 = arith.constant 0 : i32
    %c0_i32_1 = arith.constant 0 : i32
    return %arg0, %c0_i32, %c0_i32_0 : i32, i32, i32
  }
  func.func @transform_1(%arg0: i32, %arg1: i32) -> (i32, i32) {
    %c0_i32 = arith.constant 0 : i32
    %c0_i32_0 = arith.constant 0 : i32
    %c0_i32_1 = arith.constant 0 : i32
    return %c0_i32, %c0_i32_0 : i32, i32
  }
  func.func @transform_2(%arg0: i32, %arg1: i32) -> (i32, i32) {
    %c0_i32 = arith.constant 0 : i32
    %c0_i32_0 = arith.constant 0 : i32
    %c0_i32_1 = arith.constant 0 : i32
    return %c0_i32, %c0_i32_0 : i32, i32
  }
  func.func @transform_3(%arg0: i32, %arg1: i32) -> (i32, i32) {
    %c0_i32 = arith.constant 0 : i32
    %c0_i32_0 = arith.constant 0 : i32
    %c0_i32_1 = arith.constant 0 : i32
    return %c0_i32, %c0_i32_0 : i32, i32
  }
  func.func @transform_4(%arg0: i32, %arg1: i32) -> (i32, i32) {
    %c0_i32 = arith.constant 0 : i32
    %c0_i32_0 = arith.constant 0 : i32
    %c0_i32_1 = arith.constant 0 : i32
    return %c0_i32, %c0_i32_0 : i32, i32
  }
  func.func @transform_5(%arg0: i32, %arg1: i32) -> (i32, i32) {
    %c0_i32 = arith.constant 0 : i32
    %c0_i32_0 = arith.constant 0 : i32
    %c0_i32_1 = arith.constant 0 : i32
    return %c0_i32, %c0_i32_0 : i32, i32
  }
  func.func @transform_6(%arg0: i32, %arg1: i32) -> (i32, i32) {
    %c0_i32 = arith.constant 0 : i32
    %c0_i32_0 = arith.constant 0 : i32
    %c0_i32_1 = arith.constant 0 : i32
    return %c0_i32, %c0_i32_0 : i32, i32
  }
  func.func @transform_7(%arg0: i32, %arg1: i32) -> (i32, i32) {
    %c0_i32 = arith.constant 0 : i32
    %c0_i32_0 = arith.constant 0 : i32
    %c0_i32_1 = arith.constant 0 : i32
    return %c0_i32, %c0_i32_0 : i32, i32
  }
  func.func @transform_8(%arg0: i32, %arg1: i32) -> (i32, i32, i32) {
    %c0_i32 = arith.constant 0 : i32
    %c0_i32_0 = arith.constant 0 : i32
    return %arg0, %c0_i32, %arg1 : i32, i32, i32
  }
  func.func @transform_9(%arg0: i32, %arg1: i32) -> (i32, i32, i32) {
    %c0_i32 = arith.constant 0 : i32
    %c0_i32_0 = arith.constant 0 : i32
    return %arg0, %arg1, %c0_i32 : i32, i32, i32
  }
}

</mosaic_0001>

<llo_original>
// kernel: tpu_custom_call.1
$region0: #{tpu_custom_call.1}
  #allocation0 [shape = 'u32[]', space=smem, size = 0x4, offset = 0x4, fixed_abs, tag = 'smem constant byte address 0x4 - core index']
  #allocation1 [shape = 'u32[144,128]{1,0:T(1,128)}', space=vmem, size = 0x12000, scoped, tag = 'internal scratch']
  #allocation2 [shape = 'bf16[2,256]{1,0:T(2,128)(2,1)}', space=vmem, size = 0x400, scoped, tag = 'scratch operand']
  #allocation3 [shape = 'bf16[16,256]{1,0:T(16,128)(2,1)}', space=vmem, size = 0x2000, scoped, tag = 'scratch operand']
  #allocation4 [shape = 'f32[1,1]{1,0:T(1,128)S(6)}', space=smem, size = 0x200, scoped, tag = 'scoped memory for tpu_custom_call.1']
  %s0 = inlined_call_operand.hbm [shape: f32[2,16,256], index: 0, kind: input, shape index: {}]
  %s1 = inlined_call_operand.vmem [shape: bf16[16,2], index: 1, kind: input, shape index: {}]
  %s2 = inlined_call_operand.vmem [shape: bf16[2,16], index: 2, kind: input, shape index: {}]
  %s3 = inlined_call_operand.vmem [shape: bf16[16,16], index: 3, kind: input, shape index: {}]
  %s4 = inlined_call_operand.vmem [shape: f32[1,2], index: 4, kind: input, shape index: {}]
  %s5 = inlined_call_operand.vmem [shape: f32[2,1], index: 5, kind: input, shape index: {}]
  %s6 = inlined_call_operand.vmem [shape: f32[16,1], index: 6, kind: input, shape index: {}]
  %s7 = inlined_call_operand.<no memory space> [shape: f32[1,1], index: 7, kind: input, shape index: {}]
  %s8 = inlined_call_operand.hbm [shape: f32[2,16,256], index: 8, kind: output, shape index: {0}]
  %s9 = inlined_call_operand.hbm [shape: bf16[2,256,256], index: 9, kind: output, shape index: {1}]
  %10 = xla_tuple %s8, %s9
  %s11 = sld [smem:[#allocation0]]
  $region81: #{tpu_custom_call.1} parent=0
    _
  %s13 = ssub.s32 1, %s11
  %s14 = scalar_select 0, %s13, %s11
  %15 = sst [smem:[#allocation4]] %s7
  $region1: #{tpu_custom_call.1} parent=0
    #allocation5 [shape = 'u8[16384]{0}', space=vmem, size = 0x4000, scoped, tag = 'input window, operand 0, single buffered']
    #allocation6 [shape = 's32[2]{0}', space=sflag, size = 0x8, scoped, tag = 'scoped memory for tpu_custom_call.1']
    #allocation7 [shape = 's32[2]{0}', space=sflag, size = 0x8, scoped, tag = 'scoped memory for tpu_custom_call.1']
    #allocation8 [shape = 'u8[16384]{0}', space=vmem, size = 0x4000, scoped, tag = 'output window, operand 0']
    #allocation9 [shape = 'u8[131072]{0}', space=vmem, size = 0x20000, scoped, tag = 'output window, operand 1']
    #allocation10 [shape = 's32[2]{0}', space=sflag, size = 0x8, scoped, tag = 'scoped memory for tpu_custom_call.1']
    %16 = vsyncpa [#allocation6], 0
    %17 = vsyncpa [#allocation7], 0
    %s18 = scalar_lea.sflag [#allocation7], 1
    %19 = vsyncpa %s18, 0
    %20 = vsyncpa [#allocation10], 0
    %s21 = scalar_lea.sflag [#allocation10], 1
    %22 = vsyncpa %s21, 0
    loop: start=0, step=1, limit=6
    $region2: #{tpu_custom_call.1} parent=1 // loop_pre_header
      _
    $region3: #{tpu_custom_call.1} parent=1 // loop_header
      %s24 = sphi 0, %s28
      %p25 = scmp.ge.s32.totalorder %s24, 6
      %s31 = sphi 0, %s43
      %s32 = sphi 0, %s39
      %s33 = sphi 0, %s31
      %s34 = sphi 0, %s32
      %s35 = sphi 0, %s33
      %s36 = sphi 0, %s34
      %s46 = sphi 0, %s48
      %s49 = sphi 0, %s46
      %s50 = sphi 0, %s49
      %s66 = sphi 0, %s50
      %s70 = sphi 0, %s70
      %s72 = sphi 0, %s70
      %s73 = sphi 0, %s72
      %s87 = sphi 0, %s73
      %s91 = sphi 0, %s91
      %s93 = sphi 0, %s91
      %s94 = sphi 0, %s93
      %s108 = sphi 0, %s94
      %s112 = sphi 0, %s112
      %s114 = sphi 0, %s112
      %s115 = sphi 0, %s114
      %s129 = sphi 0, %s115
      %s133 = sphi 0, %s133
      %s135 = sphi 0, %s133
      %s136 = sphi 0, %s135
      %s150 = sphi 0, %s136
      %s154 = sphi 0, %s154
      %s156 = sphi 0, %s154
      %s157 = sphi 0, %s156
      %s171 = sphi 0, %s157
      %s175 = sphi 0, %s175
      %s177 = sphi 0, %s175
      %s178 = sphi 0, %s177
      %s192 = sphi 0, %s178
      %s196 = sphi 0, %s196
      %s198 = sphi 0, %s196
      %s199 = sphi 0, %s198
      %s213 = sphi 0, %s199
      %s221 = sphi 0, %s223
      %s224 = sphi 0, %s221
      %s225 = sphi 0, %s224
      %s241 = sphi 0, %s225
      %s249 = sphi 0, %s251
      %s252 = sphi 0, %s249
      %s253 = sphi 0, %s252
      %s269 = sphi 0, %s253
    $region4: #{tpu_custom_call.1} parent=1 // loop_header_branch
      %27 = sbr.rel (%p25) target = $region8
    $region5: #{tpu_custom_call.1} parent=1 // loop_body
      %s29 = ssub.s32 %s24, 1
      %s30 = ssub.s32 %s24, 2
      %s37 = sadd.s32 1, %s32
      %p38 = scmp.ge.s32.totalorder %s37, 2
      %s39 = scalar_select %p38, 0, %s37
      %s40 = sadd.s32 1, %s31
      %s41 = scalar_select %p38, %s40, %s31
      %p42 = scmp.ge.s32.totalorder %s41, 2
      %s43 = scalar_select %p42, 0, %s41
      %s44 = ssub.s32 %s31, %s43
      %p45 = scmp.eq.s32.totalorder %s44, 0
      %s47 = sadd.s32 %s46, 1
      %s48 = scalar_select %p45, %s46, %s47
      %p51 = pneg %p45
      %p52 = scmp.eq.s32.totalorder %s24, 3
      %p53 = por %p51, %p52
      %p54 = scmp.ne.s32.totalorder %s46, %s49
      %p55 = scmp.eq.s32.totalorder %s24, 0
      %p56 = por %p54, %p55
      %p57 = scmp.ne.s32.totalorder %s46, %s49
      %p58 = scmp.eq.s32.totalorder %s29, 3
      %p59 = por %p57, %p58
      %p60 = scmp.ne.s32.totalorder %s49, %s50
      %p61 = scmp.eq.s32.totalorder %s29, 0
      %p62 = por %p60, %p61
      %p63 = scmp.ne.s32.totalorder %s49, %s50
      %p64 = scmp.eq.s32.totalorder %s30, 3
      %p65 = por %p63, %p64
      %p67 = scmp.ne.s32.totalorder %s50, %s66
      %p68 = scmp.eq.s32.totalorder %s30, 0
      %p69 = por %p67, %p68
      %s71 = sadd.s32 %s70, 1
      %p74 = scmp.eq.s32.totalorder %s24, 3
      %p75 = scmp.ne.s32.totalorder %s70, %s72
      %p76 = scmp.eq.s32.totalorder %s24, 0
      %p77 = por %p75, %p76
      %p78 = scmp.ne.s32.totalorder %s70, %s72
      %p79 = scmp.eq.s32.totalorder %s29, 3
      %p80 = por %p78, %p79
      %p81 = scmp.ne.s32.totalorder %s72, %s73
      %p82 = scmp.eq.s32.totalorder %s29, 0
      %p83 = por %p81, %p82
      %p84 = scmp.ne.s32.totalorder %s72, %s73
      %p85 = scmp.eq.s32.totalorder %s30, 3
      %p86 = por %p84, %p85
      %p88 = scmp.ne.s32.totalorder %s73, %s87
      %p89 = scmp.eq.s32.totalorder %s30, 0
      %p90 = por %p88, %p89
      %s92 = sadd.s32 %s91, 1
      %p95 = scmp.eq.s32.totalorder %s24, 3
      %p96 = scmp.ne.s32.totalorder %s91, %s93
      %p97 = scmp.eq.s32.totalorder %s24, 0
      %p98 = por %p96, %p97
      %p99 = scmp.ne.s32.totalorder %s91, %s93
      %p100 = scmp.eq.s32.totalorder %s29, 3
      %p101 = por %p99, %p100
      %p102 = scmp.ne.s32.totalorder %s93, %s94
      %p103 = scmp.eq.s32.totalorder %s29, 0
      %p104 = por %p102, %p103
      %p105 = scmp.ne.s32.totalorder %s93, %s94
      %p106 = scmp.eq.s32.totalorder %s30, 3
      %p107 = por %p105, %p106
      %p109 = scmp.ne.s32.totalorder %s94, %s108
      %p110 = scmp.eq.s32.totalorder %s30, 0
      %p111 = por %p109, %p110
      %s113 = sadd.s32 %s112, 1
      %p116 = scmp.eq.s32.totalorder %s24, 3
      %p117 = scmp.ne.s32.totalorder %s112, %s114
      %p118 = scmp.eq.s32.totalorder %s24, 0
      %p119 = por %p117, %p118
      %p120 = scmp.ne.s32.totalorder %s112, %s114
      %p121 = scmp.eq.s32.totalorder %s29, 3
      %p122 = por %p120, %p121
      %p123 = scmp.ne.s32.totalorder %s114, %s115
      %p124 = scmp.eq.s32.totalorder %s29, 0
      %p125 = por %p123, %p124
      %p126 = scmp.ne.s32.totalorder %s114, %s115
      %p127 = scmp.eq.s32.totalorder %s30, 3
      %p128 = por %p126, %p127
      %p130 = scmp.ne.s32.totalorder %s115, %s129
      %p131 = scmp.eq.s32.totalorder %s30, 0
      %p132 = por %p130, %p131
      %s134 = sadd.s32 %s133, 1
      %p137 = scmp.eq.s32.totalorder %s24, 3
      %p138 = scmp.ne.s32.totalorder %s133, %s135
      %p139 = scmp.eq.s32.totalorder %s24, 0
      %p140 = por %p138, %p139
      %p141 = scmp.ne.s32.totalorder %s133, %s135
      %p142 = scmp.eq.s32.totalorder %s29, 3
      %p143 = por %p141, %p142
      %p144 = scmp.ne.s32.totalorder %s135, %s136
      %p145 = scmp.eq.s32.totalorder %s29, 0
      %p146 = por %p144, %p145
      %p147 = scmp.ne.s32.totalorder %s135, %s136
      %p148 = scmp.eq.s32.totalorder %s30, 3
      %p149 = por %p147, %p148
      %p151 = scmp.ne.s32.totalorder %s136, %s150
      %p152 = scmp.eq.s32.totalorder %s30, 0
      %p153 = por %p151, %p152
      %s155 = sadd.s32 %s154, 1
      %p158 = scmp.eq.s32.totalorder %s24, 3
      %p159 = scmp.ne.s32.totalorder %s154, %s156
      %p160 = scmp.eq.s32.totalorder %s24, 0
      %p161 = por %p159, %p160
      %p162 = scmp.ne.s32.totalorder %s154, %s156
      %p163 = scmp.eq.s32.totalorder %s29, 3
      %p164 = por %p162, %p163
      %p165 = scmp.ne.s32.totalorder %s156, %s157
      %p166 = scmp.eq.s32.totalorder %s29, 0
      %p167 = por %p165, %p166
      %p168 = scmp.ne.s32.totalorder %s156, %s157
      %p169 = scmp.eq.s32.totalorder %s30, 3
      %p170 = por %p168, %p169
      %p172 = scmp.ne.s32.totalorder %s157, %s171
      %p173 = scmp.eq.s32.totalorder %s30, 0
      %p174 = por %p172, %p173
      %s176 = sadd.s32 %s175, 1
      %p179 = scmp.eq.s32.totalorder %s24, 3
      %p180 = scmp.ne.s32.totalorder %s175, %s177
      %p181 = scmp.eq.s32.totalorder %s24, 0
      %p182 = por %p180, %p181
      %p183 = scmp.ne.s32.totalorder %s175, %s177
      %p184 = scmp.eq.s32.totalorder %s29, 3
      %p185 = por %p183, %p184
      %p186 = scmp.ne.s32.totalorder %s177, %s178
      %p187 = scmp.eq.s32.totalorder %s29, 0
      %p188 = por %p186, %p187
      %p189 = scmp.ne.s32.totalorder %s177, %s178
      %p190 = scmp.eq.s32.totalorder %s30, 3
      %p191 = por %p189, %p190
      %p193 = scmp.ne.s32.totalorder %s178, %s192
      %p194 = scmp.eq.s32.totalorder %s30, 0
      %p195 = por %p193, %p194
      %s197 = sadd.s32 %s196, 1
      %p200 = scmp.eq.s32.totalorder %s24, 3
      %p201 = scmp.ne.s32.totalorder %s196, %s198
      %p202 = scmp.eq.s32.totalorder %s24, 0
      %p203 = por %p201, %p202
      %p204 = scmp.ne.s32.totalorder %s196, %s198
      %p205 = scmp.eq.s32.totalorder %s29, 3
      %p206 = por %p204, %p205
      %p207 = scmp.ne.s32.totalorder %s198, %s199
      %p208 = scmp.eq.s32.totalorder %s29, 0
      %p209 = por %p207, %p208
      %p210 = scmp.ne.s32.totalorder %s198, %s199
      %p211 = scmp.eq.s32.totalorder %s30, 3
      %p212 = por %p210, %p211
      %p214 = scmp.ne.s32.totalorder %s199, %s213
      %p215 = scmp.eq.s32.totalorder %s30, 0
      %p216 = por %p214, %p215
      %s217 = ssub.s32 %s31, %s43
      %s218 = ssub.s32 %s32, %s39
      %s219 = sor.u32 %s217, %s218
      %p220 = scmp.eq.s32.totalorder %s219, 0
      %s222 = sadd.s32 %s221, 1
      %s223 = scalar_select %p220, %s221, %s222
      %p226 = pneg %p220
      %p227 = scmp.eq.s32.totalorder %s24, 3
      %p228 = por %p226, %p227
      %p229 = scmp.ne.s32.totalorder %s221, %s224
      %p230 = scmp.eq.s32.totalorder %s24, 0
      %p231 = por %p229, %p230
      %p232 = scmp.ne.s32.totalorder %s221, %s224
      %p233 = scmp.eq.s32.totalorder %s29, 3
      %p234 = por %p232, %p233
      %p235 = scmp.ne.s32.totalorder %s224, %s225
      %p236 = scmp.eq.s32.totalorder %s29, 0
      %p237 = por %p235, %p236
      %p238 = scmp.ne.s32.totalorder %s224, %s225
      %p239 = scmp.eq.s32.totalorder %s30, 3
      %p240 = por %p238, %p239
      %p242 = scmp.ne.s32.totalorder %s225, %s241
      %p243 = scmp.eq.s32.totalorder %s30, 0
      %p244 = por %p242, %p243
      %s245 = ssub.s32 %s31, %s43
      %s246 = ssub.s32 %s32, %s39
      %s247 = sor.u32 %s245, %s246
      %p248 = scmp.eq.s32.totalorder %s247, 0
      %s250 = sadd.s32 %s249, 1
      %s251 = scalar_select %p248, %s249, %s250
      %p254 = pneg %p248
      %p255 = scmp.eq.s32.totalorder %s24, 3
      %p256 = por %p254, %p255
      %p257 = scmp.ne.s32.totalorder %s249, %s252
      %p258 = scmp.eq.s32.totalorder %s24, 0
      %p259 = por %p257, %p258
      %p260 = scmp.ne.s32.totalorder %s249, %s252
      %p261 = scmp.eq.s32.totalorder %s29, 3
      %p262 = por %p260, %p261
      %p263 = scmp.ne.s32.totalorder %s252, %s253
      %p264 = scmp.eq.s32.totalorder %s29, 0
      %p265 = por %p263, %p264
      %p266 = scmp.ne.s32.totalorder %s252, %s253
      %p267 = scmp.eq.s32.totalorder %s30, 3
      %p268 = por %p266, %p267
      %p270 = scmp.ne.s32.totalorder %s253, %s269
      %p271 = scmp.eq.s32.totalorder %s30, 0
      %p272 = por %p270, %p271
      %p273 = scmp.le.s32.totalorder 1, %s24
      %p274 = scmp.lt.s32.totalorder %s24, 5
      %p275 = pnand %p273, %p274
      %p276 = pneg %p275
      // Predicated region
      $region9: #{tpu_custom_call.1} parent=5 // pred_check
        _
      $region10: #{tpu_custom_call.1} parent=5 // pred_check_branch
        %278 = sbr.rel (%p275) target = $region12
      $region11: #{tpu_custom_call.1} parent=5 // pred_region
        %s279 = ssub.s32 %s24, 1
        // Predicated region
        $region13: #{tpu_custom_call.1} parent=11 // pred_check
          %p280 = pneg %p62
        $region14: #{tpu_custom_call.1} parent=11 // pred_check_branch
          %282 = sbr.rel (%p280) target = $region16
        $region15: #{tpu_custom_call.1} parent=11 // pred_region
          %s284 = ssub.s32 512, 512
          %285 = vsyncadd [#allocation6], %s284
          %s286 = smul.addr %s33, 4
          %s287 = smul.addr %s286, 128
          %s288 = scalar_lea.hbm %s0, %s287
          %s289 = sshll.u32 [#allocation5], 4
          %s290 = int_to_ptr.vmem [resolvable:$true] %s289
          %295 = dma.hbm_to_vmem [thread:$0]  %s288, 512, %s290, [#allocation6], 256, 256, 16
        $region16: #{tpu_custom_call.1} parent=11 // pred_fallthru
          _
        // Predicated region
        $region17: #{tpu_custom_call.1} parent=11 // pred_check
          %p296 = pneg %p83
        $region18: #{tpu_custom_call.1} parent=11 // pred_check_branch
          %298 = sbr.rel (%p296) target = $region20
        $region19: #{tpu_custom_call.1} parent=11 // pred_region
          _
        $region20: #{tpu_custom_call.1} parent=11 // pred_fallthru
          _
        // Predicated region
        $region21: #{tpu_custom_call.1} parent=11 // pred_check
          %p299 = pneg %p104
        $region22: #{tpu_custom_call.1} parent=11 // pred_check_branch
          %301 = sbr.rel (%p299) target = $region24
        $region23: #{tpu_custom_call.1} parent=11 // pred_region
          _
        $region24: #{tpu_custom_call.1} parent=11 // pred_fallthru
          _
        // Predicated region
        $region25: #{tpu_custom_call.1} parent=11 // pred_check
          %p302 = pneg %p125
        $region26: #{tpu_custom_call.1} parent=11 // pred_check_branch
          %304 = sbr.rel (%p302) target = $region28
        $region27: #{tpu_custom_call.1} parent=11 // pred_region
          _
        $region28: #{tpu_custom_call.1} parent=11 // pred_fallthru
          _
        // Predicated region
        $region29: #{tpu_custom_call.1} parent=11 // pred_check
          %p305 = pneg %p146
        $region30: #{tpu_custom_call.1} parent=11 // pred_check_branch
          %307 = sbr.rel (%p305) target = $region32
        $region31: #{tpu_custom_call.1} parent=11 // pred_region
          _
        $region32: #{tpu_custom_call.1} parent=11 // pred_fallthru
          _
        // Predicated region
        $region33: #{tpu_custom_call.1} parent=11 // pred_check
          %p308 = pneg %p167
        $region34: #{tpu_custom_call.1} parent=11 // pred_check_branch
          %310 = sbr.rel (%p308) target = $region36
        $region35: #{tpu_custom_call.1} parent=11 // pred_region
          _
        $region36: #{tpu_custom_call.1} parent=11 // pred_fallthru
          _
        // Predicated region
        $region37: #{tpu_custom_call.1} parent=11 // pred_check
          %p311 = pneg %p188
        $region38: #{tpu_custom_call.1} parent=11 // pred_check_branch
          %313 = sbr.rel (%p311) target = $region40
        $region39: #{tpu_custom_call.1} parent=11 // pred_region
          _
        $region40: #{tpu_custom_call.1} parent=11 // pred_fallthru
          _
        // Predicated region
        $region41: #{tpu_custom_call.1} parent=11 // pred_check
          %p314 = pneg %p209
        $region42: #{tpu_custom_call.1} parent=11 // pred_check_branch
          %316 = sbr.rel (%p314) target = $region44
        $region43: #{tpu_custom_call.1} parent=11 // pred_region
          _
        $region44: #{tpu_custom_call.1} parent=11 // pred_fallthru
          _
      $region12: #{tpu_custom_call.1} parent=5 // pred_fallthru
        _
      %p317 = scmp.lt.s32.totalorder %s24, 4
      // Predicated region
      $region45: #{tpu_custom_call.1} parent=5 // pred_check
        %p318 = pneg %p317
      $region46: #{tpu_custom_call.1} parent=5 // pred_check_branch
        %320 = sbr.rel (%p318) target = $region48
      $region47: #{tpu_custom_call.1} parent=5 // pred_region
        _
      $region48: #{tpu_custom_call.1} parent=5 // pred_fallthru
        _
      %p321 = scmp.le.s32.totalorder 1, %s24
      %p322 = scmp.lt.s32.totalorder %s24, 5
      %p323 = pnand %p321, %p322
      %p324 = pneg %p323
      // Predicated region
      $region49: #{tpu_custom_call.1} parent=5 // pred_check
        _
      $region50: #{tpu_custom_call.1} parent=5 // pred_check_branch
        %326 = sbr.rel (%p323) target = $region52
      $region51: #{tpu_custom_call.1} parent=5 // pred_region
        %s327 = ssub.s32 %s24, 1
        // Predicated region
        $region53: #{tpu_custom_call.1} parent=51 // pred_check
          %p328 = pneg %p62
        $region54: #{tpu_custom_call.1} parent=51 // pred_check_branch
          %330 = sbr.rel (%p328) target = $region56
        $region55: #{tpu_custom_call.1} parent=51 // pred_region
          %331 = dma.done [#allocation6], 512
        $region56: #{tpu_custom_call.1} parent=51 // pred_fallthru
          _
        %p332 = pneg %p62
        %p333 = pneg %p59
        %p334 = pneg %p83
        %p335 = pneg %p80
        %p336 = pneg %p104
        %p337 = pneg %p101
        %p338 = pneg %p125
        %p339 = pneg %p122
        %p340 = pneg %p146
        %p341 = pneg %p143
        %p342 = pneg %p167
        %p343 = pneg %p164
        %p344 = pneg %p188
        %p345 = pneg %p185
        %p346 = pneg %p209
        %p347 = pneg %p206
        %p348 = pneg %p237
        %p349 = pneg %p234
        %s350 = sand.u32 %s224, 1
        %s351 = scalar_lea.sflag [#allocation7], %s350
        %s352 = sand.u32 %s224, 1
        %s353 = smul.addr %s352, 16
        %s354 = scalar_lea.vmem [#allocation8], %s353
        %p355 = pneg %p265
        %p356 = pneg %p262
        %s357 = sand.u32 %s252, 1
        %s358 = scalar_lea.sflag [#allocation10], %s357
        %s359 = sand.u32 %s252, 1
        %s360 = smul.addr %s359, 128
        %s361 = scalar_lea.vmem [#allocation9], %s360
        %s362 = smul.u32 16, %s34
        %p364 = scmp.eq.s32.totalorder %s34, 0
        // Predicated region
        $region57: #{tpu_custom_call.1} parent=51 // pred_check
          %p365 = pneg %p364
        $region58: #{tpu_custom_call.1} parent=51 // pred_check_branch
          %367 = sbr.rel (%p365) target = $region60
        $region59: #{tpu_custom_call.1} parent=51 // pred_region
          %v368 = vld [vmem:[#allocation5] sm:$0xff]
          %v369 = vld [vmem:[#allocation5 + $0x8] sm:$0xff]
          %v370 = vld [vmem:[#allocation5 + $0x10] sm:$0xff]
          %v371 = vld [vmem:[#allocation5 + $0x18] sm:$0xff]
          %v372 = vpack.c.bf16 %v370, %v368
          %v373 = vpack.c.bf16 %v371, %v369
          %v374 = vld [vmem:[%s2] sm:$0x1]
          %v375 = vld [vmem:[%s5] sm:$0x3]
          %377 = vset.pattern.permute.xlu0 0
          %378 = vperm.xlu0 %377, %v375
          %v379 = vpop.permute.xlu0 %378
          %vm381 = vcmask 130048
          %v383 = vsel %vm381, %v374, 0
          %385 = vmatprep.subr.bf16.mxu0 %v373
          %386 = vmatpush1.bf16.msra.mxu0 %v372
          %387 = vmatprep.subr.bf16.mxu0 0
          %388 = vmatpush1.bf16.msra.mxu0 0
          %389 = vmatprep.subr.bf16.mxu0 0
          %390 = vmatpush1.bf16.msra.mxu0 0
          %391 = vmatprep.subr.bf16.mxu0 0
          %392 = vmatpush1.bf16.msra.mxu0 0
          %393 = vmatprep.subr.bf16.mxu0 0
          %394 = vmatpush1.bf16.msra.mxu0 0
          %395 = vmatprep.subr.bf16.mxu0 0
          %396 = vmatpush1.bf16.msra.mxu0 0
          %397 = vmatprep.subr.bf16.mxu0 0
          %398 = vmatpush1.bf16.msra.mxu0 0
          %399 = vmatprep.subr.bf16.mxu0 0
          %400 = vmatpush1.bf16.msra.mxu0 0
          %401 = vmatprep.subr.bf16.mxu0 0
          %402 = vmatpush1.bf16.msra.mxu0 0
          %403 = vmatprep.subr.bf16.mxu0 0
          %404 = vmatpush1.bf16.msra.mxu0 0
          %405 = vmatprep.subr.bf16.mxu0 0
          %406 = vmatpush1.bf16.msra.mxu0 0
          %407 = vmatprep.subr.bf16.mxu0 0
          %408 = vmatpush1.bf16.msra.mxu0 0
          %409 = vmatprep.subr.bf16.mxu0 0
          %410 = vmatpush1.bf16.msra.mxu0 0
          %411 = vmatprep.subr.bf16.mxu0 0
          %412 = vmatpush1.bf16.msra.mxu0 0
          %413 = vmatprep.subr.bf16.mxu0 0
          %414 = vmatpush1.bf16.msra.mxu0 0
          %415 = vmatprep.subr.bf16.mxu0 0
          %416 = vmatpush1.bf16.msra.mxu0 0
          %417 = vmatprep.mubr.bf16.mxu0 0
          %418 = vmatmul.mubr.bf16.gmra.mrb[0].mxu0 %v383
          %v419 = vpop.f32.mrb[0].mxu0
          %v420 = vadd.f32 %v379, %v419
          %v421 = vpop.f32.mrb[0].mxu0
          %v422 = vadd.f32 %v379, %v421
          %v423 = vpop.f32.mrb[0].mxu0
          %v424 = vpop.f32.mrb[0].mxu0
          %425 = vdwg.mxu0
          %v426 = vld [vmem:[%s3] sm:$0xf]
          %v427 = vld [vmem:[%s3 + $0x4] sm:$0xf]
          %v428 = vld [vmem:[%s6] sm:$0xff]
          %v429 = vld [vmem:[%s6 + $0x8] sm:$0xff]
          %431 = vset.pattern.permute.xlu0 0
          %432 = vperm.xlu0 %431, %v428
          %v433 = vpop.permute.xlu0 %432
          %436 = vset.pattern.permute.xlu0 0
          %437 = vperm.xlu0 %436, %v429
          %v438 = vpop.permute.xlu0 %437
          %v442 = vunpack.c.l.b16 %v426
          %v443 = vunpack.c.l.b16 %v427
          %v444 = vpack.c.b16 %v443, %v442
          %v446 = vsel %vm381, %v444, 0
          %448 = vmatprep.subr.bf16.mxu0 %v373
          %449 = vmatpush1.bf16.msra.mxu0 %v372
          %450 = vmatprep.subr.bf16.mxu0 0
          %451 = vmatpush1.bf16.msra.mxu0 0
          %452 = vmatprep.subr.bf16.mxu0 0
          %453 = vmatpush1.bf16.msra.mxu0 0
          %454 = vmatprep.subr.bf16.mxu0 0
          %455 = vmatpush1.bf16.msra.mxu0 0
          %456 = vmatprep.subr.bf16.mxu0 0
          %457 = vmatpush1.bf16.msra.mxu0 0
          %458 = vmatprep.subr.bf16.mxu0 0
          %459 = vmatpush1.bf16.msra.mxu0 0
          %460 = vmatprep.subr.bf16.mxu0 0
          %461 = vmatpush1.bf16.msra.mxu0 0
          %462 = vmatprep.subr.bf16.mxu0 0
          %463 = vmatpush1.bf16.msra.mxu0 0
          %464 = vmatprep.subr.bf16.mxu0 0
          %465 = vmatpush1.bf16.msra.mxu0 0
          %466 = vmatprep.subr.bf16.mxu0 0
          %467 = vmatpush1.bf16.msra.mxu0 0
          %468 = vmatprep.subr.bf16.mxu0 0
          %469 = vmatpush1.bf16.msra.mxu0 0
          %470 = vmatprep.subr.bf16.mxu0 0
          %471 = vmatpush1.bf16.msra.mxu0 0
          %472 = vmatprep.subr.bf16.mxu0 0
          %473 = vmatpush1.bf16.msra.mxu0 0
          %474 = vmatprep.subr.bf16.mxu0 0
          %475 = vmatpush1.bf16.msra.mxu0 0
          %476 = vmatprep.subr.bf16.mxu0 0
          %477 = vmatpush1.bf16.msra.mxu0 0
          %478 = vmatprep.subr.bf16.mxu0 0
          %479 = vmatpush1.bf16.msra.mxu0 0
          %480 = vmatprep.mubr.bf16.mxu0 0
          %481 = vmatmul.mubr.bf16.gmra.mrb[0].mxu0 %v446
          %v482 = vpop.f32.mrb[0].mxu0
          %v483 = vadd.f32 %v433, %v482
          %v484 = vpop.f32.mrb[0].mxu0
          %v485 = vadd.f32 %v433, %v484
          %v486 = vpop.f32.mrb[0].mxu0
          %v487 = vadd.f32 %v438, %v486
          %v488 = vpop.f32.mrb[0].mxu0
          %v489 = vadd.f32 %v438, %v488
          %490 = vdwg.mxu0
          %v491 = vpack.c.bf16 %v420, %v420
          %v492 = vpack.c.bf16 %v422, %v422
          %v495 = vcombine.low %v491, %v492
          %v497 = vunpack.c.l.s4 1966171168
          %v498 = vunpack.c.0.s8 %v497
          %v499 = vlaneseq
          %v500 = vshrl.u32 %v499, 7
          %v501 = vsub.s32 %v498, %v500
          %v502 = vrot.slane %v495, %v501
          %v504 = vunpack.c.l.s4 1966171168
          %v505 = vunpack.c.0.s8 %v504
          %v506 = vlaneseq
          %v507 = vshrl.u32 %v506, 7
          %v508 = vsub.s32 %v505, %v507
          %v509 = vrot.slane %v502, %v508
          %511 = vst [vmem:[#allocation2] sm:$0x3] %v509
          %v512 = vpack.c.bf16 %v487, %v483
          %v513 = vpack.c.bf16 %v489, %v485
          %514 = vst [vmem:[#allocation3] sm:$0xff] %v512
          %515 = vst [vmem:[#allocation3 + $0x8] sm:$0xff] %v513
        $region60: #{tpu_custom_call.1} parent=51 // pred_fallthru
          _
        %s516 = smul.u32 %s34, 128
        %s517 = sshra.s32 %s516, 7
        %s518 = sand.u32 %s516, 127
        %s519 = smul.addr %s517, 8
        %s520 = scalar_lea.vmem [#allocation5], %s519
        %v521 = vld [vmem:[%s520] sm:$0xff]
        %v522 = vld [vmem:[%s520 + $0x10] sm:$0xff]
        %v523 = vpack.c.bf16 %v522, %v521
        %v524 = vld [vmem:[%s1] sm:$0xf]
        %v525 = vld [vmem:[%s1 + $0x4] sm:$0xf]
        %v526 = vld [vmem:[%s4] sm:$0x1]
        %v528 = vlaneseq
        %v529 = vshrl.u32 %v528, 7
        %v530 = vsub.s32 0, %v529
        %v531 = vrot.slane %v526, %v530
        %533 = vxpose.xlu0.c.b16.start [1/8] %v523, 128
        %534 = vxpose.xlu0.c.b16.cont [2/8] 0, 128
        %535 = vxpose.xlu0.c.b16.cont [3/8] 0, 128
        %536 = vxpose.xlu0.c.b16.cont [4/8] 0, 128
        %537 = vxpose.xlu0.c.b16.cont [5/8] 0, 128
        %538 = vxpose.xlu0.c.b16.cont [6/8] 0, 128
        %539 = vxpose.xlu0.c.b16.cont [7/8] 0, 128
        %540 = vxpose.xlu0.c.b16.end [8/8] 0, 128
        %v541 = vpop.trf.xlu0
        %v542 = vpop.trf.xlu0
        %v543 = vpop.trf.xlu0
        %v544 = vpop.trf.xlu0
        %v545 = vpop.trf.xlu0
        %v546 = vpop.trf.xlu0
        %v547 = vpop.trf.xlu0
        %v548 = vpop.trf.xlu0
        %v551 = vunpack.c.l.b16 %v524
        %v552 = vunpack.c.l.b16 %v525
        %v553 = vpack.c.b16 %v552, %v551
        %vm555 = vcmask 130048
        %v557 = vsel %vm555, %v541, 0
        %v560 = vsel %vm555, %v542, 0
        %v563 = vsel %vm555, %v543, 0
        %v566 = vsel %vm555, %v544, 0
        %v569 = vsel %vm555, %v545, 0
        %v572 = vsel %vm555, %v546, 0
        %v575 = vsel %vm555, %v547, 0
        %v578 = vsel %vm555, %v548, 0
        %580 = vmatprep.subr.bf16.mxu0 0
        %581 = vmatpush1.bf16.msra.mxu0 %v553
        %582 = vmatprep.subr.bf16.mxu0 0
        %583 = vmatpush1.bf16.msra.mxu0 0
        %584 = vmatprep.subr.bf16.mxu0 0
        %585 = vmatpush1.bf16.msra.mxu0 0
        %586 = vmatprep.subr.bf16.mxu0 0
        %587 = vmatpush1.bf16.msra.mxu0 0
        %588 = vmatprep.subr.bf16.mxu0 0
        %589 = vmatpush1.bf16.msra.mxu0 0
        %590 = vmatprep.subr.bf16.mxu0 0
        %591 = vmatpush1.bf16.msra.mxu0 0
        %592 = vmatprep.subr.bf16.mxu0 0
        %593 = vmatpush1.bf16.msra.mxu0 0
        %594 = vmatprep.subr.bf16.mxu0 0
        %595 = vmatpush1.bf16.msra.mxu0 0
        %596 = vmatprep.subr.bf16.mxu0 0
        %597 = vmatpush1.bf16.msra.mxu0 0
        %598 = vmatprep.subr.bf16.mxu0 0
        %599 = vmatpush1.bf16.msra.mxu0 0
        %600 = vmatprep.subr.bf16.mxu0 0
        %601 = vmatpush1.bf16.msra.mxu0 0
        %602 = vmatprep.subr.bf16.mxu0 0
        %603 = vmatpush1.bf16.msra.mxu0 0
        %604 = vmatprep.subr.bf16.mxu0 0
        %605 = vmatpush1.bf16.msra.mxu0 0
        %606 = vmatprep.subr.bf16.mxu0 0
        %607 = vmatpush1.bf16.msra.mxu0 0
        %608 = vmatprep.subr.bf16.mxu0 0
        %609 = vmatpush1.bf16.msra.mxu0 0
        %610 = vmatprep.subr.bf16.mxu0 0
        %611 = vmatpush1.bf16.msra.mxu0 0
        %612 = vmatprep.mubr.bf16.mxu0 0
        %613 = vmatmul.mubr.bf16.gmra.mrb[0].mxu0 %v557
        %v614 = vpop.f32.mrb[0].mxu0
        %v615 = vadd.f32 %v531, %v614
        %v616 = vpop.f32.mrb[0].mxu0
        %v617 = vpop.f32.mrb[0].mxu0
        %v618 = vadd.f32 %v531, %v617
        %v619 = vpop.f32.mrb[0].mxu0
        %620 = vmatprep.mubr.bf16.mxu0 0
        %621 = vmatmul.mubr.bf16.gmra.mrb[0].mxu0 %v560
        %v622 = vpop.f32.mrb[0].mxu0
        %v623 = vadd.f32 %v531, %v622
        %v624 = vpop.f32.mrb[0].mxu0
        %v625 = vpop.f32.mrb[0].mxu0
        %v626 = vadd.f32 %v531, %v625
        %v627 = vpop.f32.mrb[0].mxu0
        %628 = vmatprep.mubr.bf16.mxu0 0
        %629 = vmatmul.mubr.bf16.gmra.mrb[0].mxu0 %v563
        %v630 = vpop.f32.mrb[0].mxu0
        %v631 = vadd.f32 %v531, %v630
        %v632 = vpop.f32.mrb[0].mxu0
        %v633 = vpop.f32.mrb[0].mxu0
        %v634 = vadd.f32 %v531, %v633
        %v635 = vpop.f32.mrb[0].mxu0
        %636 = vmatprep.mubr.bf16.mxu0 0
        %637 = vmatmul.mubr.bf16.gmra.mrb[0].mxu0 %v566
        %v638 = vpop.f32.mrb[0].mxu0
        %v639 = vadd.f32 %v531, %v638
        %v640 = vpop.f32.mrb[0].mxu0
        %v641 = vpop.f32.mrb[0].mxu0
        %v642 = vadd.f32 %v531, %v641
        %v643 = vpop.f32.mrb[0].mxu0
        %644 = vmatprep.mubr.bf16.mxu0 0
        %645 = vmatmul.mubr.bf16.gmra.mrb[0].mxu0 %v569
        %v646 = vpop.f32.mrb[0].mxu0
        %v647 = vadd.f32 %v531, %v646
        %v648 = vpop.f32.mrb[0].mxu0
        %v649 = vpop.f32.mrb[0].mxu0
        %v650 = vadd.f32 %v531, %v649
        %v651 = vpop.f32.mrb[0].mxu0
        %652 = vmatprep.mubr.bf16.mxu0 0
        %653 = vmatmul.mubr.bf16.gmra.mrb[0].mxu0 %v572
        %v654 = vpop.f32.mrb[0].mxu0
        %v655 = vadd.f32 %v531, %v654
        %v656 = vpop.f32.mrb[0].mxu0
        %v657 = vpop.f32.mrb[0].mxu0
        %v658 = vadd.f32 %v531, %v657
        %v659 = vpop.f32.mrb[0].mxu0
        %660 = vmatprep.mubr.bf16.mxu0 0
        %661 = vmatmul.mubr.bf16.gmra.mrb[0].mxu0 %v575
        %v662 = vpop.f32.mrb[0].mxu0
        %v663 = vadd.f32 %v531, %v662
        %v664 = vpop.f32.mrb[0].mxu0
        %v665 = vpop.f32.mrb[0].mxu0
        %v666 = vadd.f32 %v531, %v665
        %v667 = vpop.f32.mrb[0].mxu0
        %668 = vmatprep.mubr.bf16.mxu0 0
        %669 = vmatmul.mubr.bf16.gmra.mrb[0].mxu0 %v578
        %v670 = vpop.f32.mrb[0].mxu0
        %v671 = vadd.f32 %v531, %v670
        %v672 = vpop.f32.mrb[0].mxu0
        %v673 = vpop.f32.mrb[0].mxu0
        %v674 = vadd.f32 %v531, %v673
        %v675 = vpop.f32.mrb[0].mxu0
        %676 = vdwg.mxu0
        %v677 = vpack.c.bf16 %v618, %v615
        %v678 = vpack.c.bf16 %v626, %v623
        %v679 = vpack.c.bf16 %v634, %v631
        %v680 = vpack.c.bf16 %v642, %v639
        %v681 = vpack.c.bf16 %v650, %v647
        %v682 = vpack.c.bf16 %v658, %v655
        %v683 = vpack.c.bf16 %v666, %v663
        %v684 = vpack.c.bf16 %v674, %v671
        %v685 = vld [vmem:[#allocation2] sm:$0x3]
        %v688 = vunpack.c.l.s4 1966171168
        %v689 = vunpack.c.0.s8 %v688
        %v690 = vlaneseq
        %v691 = vshrl.u32 %v690, 7
        %v692 = vsub.s32 %v689, %v691
        %v693 = vrot.slane %v685, %v692
        %v694 = vcombine.high %v693, %v693
        %v696 = vunpack.c.l.s4 1966171168
        %v697 = vunpack.c.0.s8 %v696
        %v698 = vlaneseq
        %v699 = vshrl.u32 %v698, 7
        %v700 = vsub.s32 %v697, %v699
        %v701 = vrot.slane %v693, %v700
        %v703 = vunpack.c.l.s4 1966171168
        %v704 = vunpack.c.0.s8 %v703
        %v705 = vlaneseq
        %v706 = vshrl.u32 %v705, 7
        %v707 = vsub.s32 %v704, %v706
        %v708 = vrot.slane %v694, %v707
        %vm709 = vcmask 15360
        %v711 = vsel %vm709, %v677, 0
        %v714 = vsel %vm709, %v678, 0
        %v717 = vsel %vm709, %v679, 0
        %v720 = vsel %vm709, %v680, 0
        %v723 = vsel %vm709, %v681, 0
        %v726 = vsel %vm709, %v682, 0
        %v729 = vsel %vm709, %v683, 0
        %v732 = vsel %vm709, %v684, 0
        %vm734 = vcmask 1040384
        %v736 = vsel %vm734, %v701, 0
        %v739 = vsel %vm734, %v708, 0
        %741 = vmatprep.subr.bf16.mxu0 %v739
        %742 = vmatpush1.bf16.msra.mxu0 %v736
        %743 = vmatprep.subr.bf16.mxu0 0
        %744 = vmatpush1.bf16.msra.mxu0 0
        %745 = vmatprep.subr.bf16.mxu0 0
        %746 = vmatpush1.bf16.msra.mxu0 0
        %747 = vmatprep.subr.bf16.mxu0 0
        %748 = vmatpush1.bf16.msra.mxu0 0
        %749 = vmatprep.subr.bf16.mxu0 0
        %750 = vmatpush1.bf16.msra.mxu0 0
        %751 = vmatprep.subr.bf16.mxu0 0
        %752 = vmatpush1.bf16.msra.mxu0 0
        %753 = vmatprep.subr.bf16.mxu0 0
        %754 = vmatpush1.bf16.msra.mxu0 0
        %755 = vmatprep.subr.bf16.mxu0 0
        %756 = vmatpush1.bf16.msra.mxu0 0
        %757 = vmatprep.subr.bf16.mxu0 0
        %758 = vmatpush1.bf16.msra.mxu0 0
        %759 = vmatprep.subr.bf16.mxu0 0
        %760 = vmatpush1.bf16.msra.mxu0 0
        %761 = vmatprep.subr.bf16.mxu0 0
        %762 = vmatpush1.bf16.msra.mxu0 0
        %763 = vmatprep.subr.bf16.mxu0 0
        %764 = vmatpush1.bf16.msra.mxu0 0
        %765 = vmatprep.subr.bf16.mxu0 0
        %766 = vmatpush1.bf16.msra.mxu0 0
        %767 = vmatprep.subr.bf16.mxu0 0
        %768 = vmatpush1.bf16.msra.mxu0 0
        %769 = vmatprep.subr.bf16.mxu0 0
        %770 = vmatpush1.bf16.msra.mxu0 0
        %771 = vmatprep.subr.bf16.mxu0 0
        %772 = vmatpush1.bf16.msra.mxu0 0
        %773 = vmatprep.mubr.bf16.mxu0 0
        %774 = vmatmul.mubr.bf16.gmra.mrb[0].mxu0 %v711
        %v775 = vpop.f32.mrb[0].mxu0
        %v776 = vadd.f32 0.0, %v775
        %v777 = vpop.f32.mrb[0].mxu0
        %v778 = vadd.f32 0.0, %v777
        %v779 = vpop.f32.mrb[0].mxu0
        %v780 = vadd.f32 0.0, %v779
        %v781 = vpop.f32.mrb[0].mxu0
        %v782 = vadd.f32 0.0, %v781
        %783 = vmatprep.mubr.bf16.mxu0 0
        %784 = vmatmul.mubr.bf16.gmra.mrb[0].mxu0 %v714
        %v785 = vpop.f32.mrb[0].mxu0
        %v786 = vadd.f32 0.0, %v785
        %v787 = vpop.f32.mrb[0].mxu0
        %v788 = vadd.f32 0.0, %v787
        %v789 = vpop.f32.mrb[0].mxu0
        %v790 = vadd.f32 0.0, %v789
        %v791 = vpop.f32.mrb[0].mxu0
        %v792 = vadd.f32 0.0, %v791
        %793 = vmatprep.mubr.bf16.mxu0 0
        %794 = vmatmul.mubr.bf16.gmra.mrb[0].mxu0 %v717
        %v795 = vpop.f32.mrb[0].mxu0
        %v796 = vadd.f32 0.0, %v795
        %v797 = vpop.f32.mrb[0].mxu0
        %v798 = vadd.f32 0.0, %v797
        %v799 = vpop.f32.mrb[0].mxu0
        %v800 = vadd.f32 0.0, %v799
        %v801 = vpop.f32.mrb[0].mxu0
        %v802 = vadd.f32 0.0, %v801
        %803 = vmatprep.mubr.bf16.mxu0 0
        %804 = vmatmul.mubr.bf16.gmra.mrb[0].mxu0 %v720
        %v805 = vpop.f32.mrb[0].mxu0
        %v806 = vadd.f32 0.0, %v805
        %v807 = vpop.f32.mrb[0].mxu0
        %v808 = vadd.f32 0.0, %v807
        %v809 = vpop.f32.mrb[0].mxu0
        %v810 = vadd.f32 0.0, %v809
        %v811 = vpop.f32.mrb[0].mxu0
        %v812 = vadd.f32 0.0, %v811
        %813 = vmatprep.mubr.bf16.mxu0 0
        %814 = vmatmul.mubr.bf16.gmra.mrb[0].mxu0 %v723
        %v815 = vpop.f32.mrb[0].mxu0
        %v816 = vadd.f32 0.0, %v815
        %v817 = vpop.f32.mrb[0].mxu0
        %v818 = vadd.f32 0.0, %v817
        %v819 = vpop.f32.mrb[0].mxu0
        %v820 = vadd.f32 0.0, %v819
        %v821 = vpop.f32.mrb[0].mxu0
        %v822 = vadd.f32 0.0, %v821
        %823 = vmatprep.mubr.bf16.mxu0 0
        %824 = vmatmul.mubr.bf16.gmra.mrb[0].mxu0 %v726
        %v825 = vpop.f32.mrb[0].mxu0
        %v826 = vadd.f32 0.0, %v825
        %v827 = vpop.f32.mrb[0].mxu0
        %v828 = vadd.f32 0.0, %v827
        %v829 = vpop.f32.mrb[0].mxu0
        %v830 = vadd.f32 0.0, %v829
        %v831 = vpop.f32.mrb[0].mxu0
        %v832 = vadd.f32 0.0, %v831
        %833 = vmatprep.mubr.bf16.mxu0 0
        %834 = vmatmul.mubr.bf16.gmra.mrb[0].mxu0 %v729
        %v835 = vpop.f32.mrb[0].mxu0
        %v836 = vadd.f32 0.0, %v835
        %v837 = vpop.f32.mrb[0].mxu0
        %v838 = vadd.f32 0.0, %v837
        %v839 = vpop.f32.mrb[0].mxu0
        %v840 = vadd.f32 0.0, %v839
        %v841 = vpop.f32.mrb[0].mxu0
        %v842 = vadd.f32 0.0, %v841
        %843 = vmatprep.mubr.bf16.mxu0 0
        %844 = vmatmul.mubr.bf16.gmra.mrb[0].mxu0 %v732
        %v845 = vpop.f32.mrb[0].mxu0
        %v846 = vadd.f32 0.0, %v845
        %v847 = vpop.f32.mrb[0].mxu0
        %v848 = vadd.f32 0.0, %v847
        %v849 = vpop.f32.mrb[0].mxu0
        %v850 = vadd.f32 0.0, %v849
        %v851 = vpop.f32.mrb[0].mxu0
        %v852 = vadd.f32 0.0, %v851
        %853 = vdwg.mxu0
        %v854 = vmax.f32 %v776, %v778
        %855 = vmax.xlane.f32.xlu0 %v854
        %v856 = vpop.xlane.xlu0 %855
        %v857 = vmax.f32 %v780, %v782
        %858 = vmax.xlane.f32.xlu0 %v857
        %v859 = vpop.xlane.xlu0 %858
        %v860 = vmax.f32 %v786, %v788
        %861 = vmax.xlane.f32.xlu0 %v860
        %v862 = vpop.xlane.xlu0 %861
        %v863 = vmax.f32 %v790, %v792
        %864 = vmax.xlane.f32.xlu0 %v863
        %v865 = vpop.xlane.xlu0 %864
        %v866 = vmax.f32 %v796, %v798
        %867 = vmax.xlane.f32.xlu0 %v866
        %v868 = vpop.xlane.xlu0 %867
        %v869 = vmax.f32 %v800, %v802
        %870 = vmax.xlane.f32.xlu0 %v869
        %v871 = vpop.xlane.xlu0 %870
        %v872 = vmax.f32 %v806, %v808
        %873 = vmax.xlane.f32.xlu0 %v872
        %v874 = vpop.xlane.xlu0 %873
        %v875 = vmax.f32 %v810, %v812
        %876 = vmax.xlane.f32.xlu0 %v875
        %v877 = vpop.xlane.xlu0 %876
        %v878 = vmax.f32 %v816, %v818
        %879 = vmax.xlane.f32.xlu0 %v878
        %v880 = vpop.xlane.xlu0 %879
        %v881 = vmax.f32 %v820, %v822
        %882 = vmax.xlane.f32.xlu0 %v881
        %v883 = vpop.xlane.xlu0 %882
        %v884 = vmax.f32 %v826, %v828
        %885 = vmax.xlane.f32.xlu0 %v884
        %v886 = vpop.xlane.xlu0 %885
        %v887 = vmax.f32 %v830, %v832
        %888 = vmax.xlane.f32.xlu0 %v887
        %v889 = vpop.xlane.xlu0 %888
        %v890 = vmax.f32 %v836, %v838
        %891 = vmax.xlane.f32.xlu0 %v890
        %v892 = vpop.xlane.xlu0 %891
        %v893 = vmax.f32 %v840, %v842
        %894 = vmax.xlane.f32.xlu0 %v893
        %v895 = vpop.xlane.xlu0 %894
        %v896 = vmax.f32 %v846, %v848
        %897 = vmax.xlane.f32.xlu0 %v896
        %v898 = vpop.xlane.xlu0 %897
        %v899 = vmax.f32 %v850, %v852
        %900 = vmax.xlane.f32.xlu0 %v899
        %v901 = vpop.xlane.xlu0 %900
        %v902 = vsub.f32 %v776, %v856
        %v903 = vsub.f32 %v778, %v856
        %v904 = vsub.f32 %v780, %v859
        %v905 = vsub.f32 %v782, %v859
        %v906 = vsub.f32 %v786, %v862
        %v907 = vsub.f32 %v788, %v862
        %v908 = vsub.f32 %v790, %v865
        %v909 = vsub.f32 %v792, %v865
        %v910 = vsub.f32 %v796, %v868
        %v911 = vsub.f32 %v798, %v868
        %v912 = vsub.f32 %v800, %v871
        %v913 = vsub.f32 %v802, %v871
        %v914 = vsub.f32 %v806, %v874
        %v915 = vsub.f32 %v808, %v874
        %v916 = vsub.f32 %v810, %v877
        %v917 = vsub.f32 %v812, %v877
        %v918 = vsub.f32 %v816, %v880
        %v919 = vsub.f32 %v818, %v880
        %v920 = vsub.f32 %v820, %v883
        %v921 = vsub.f32 %v822, %v883
        %v922 = vsub.f32 %v826, %v886
        %v923 = vsub.f32 %v828, %v886
        %v924 = vsub.f32 %v830, %v889
        %v925 = vsub.f32 %v832, %v889
        %v926 = vsub.f32 %v836, %v892
        %v927 = vsub.f32 %v838, %v892
        %v928 = vsub.f32 %v840, %v895
        %v929 = vsub.f32 %v842, %v895
        %v930 = vsub.f32 %v846, %v898
        %v931 = vsub.f32 %v848, %v898
        %v932 = vsub.f32 %v850, %v901
        %v933 = vsub.f32 %v852, %v901
        %v934 = vmul.f32 %v902, 1.442695
        %v935 = vpow.pop %v934
        %v936 = vmul.f32 %v903, 1.442695
        %v937 = vpow.pop %v936
        %v938 = vmul.f32 %v904, 1.442695
        %v939 = vpow.pop %v938
        %v940 = vmul.f32 %v905, 1.442695
        %v941 = vpow.pop %v940
        %v942 = vmul.f32 %v906, 1.442695
        %v943 = vpow.pop %v942
        %v944 = vmul.f32 %v907, 1.442695
        %v945 = vpow.pop %v944
        %v946 = vmul.f32 %v908, 1.442695
        %v947 = vpow.pop %v946
        %v948 = vmul.f32 %v909, 1.442695
        %v949 = vpow.pop %v948
        %v950 = vmul.f32 %v910, 1.442695
        %v951 = vpow.pop %v950
        %v952 = vmul.f32 %v911, 1.442695
        %v953 = vpow.pop %v952
        %v954 = vmul.f32 %v912, 1.442695
        %v955 = vpow.pop %v954
        %v956 = vmul.f32 %v913, 1.442695
        %v957 = vpow.pop %v956
        %v958 = vmul.f32 %v914, 1.442695
        %v959 = vpow.pop %v958
        %v960 = vmul.f32 %v915, 1.442695
        %v961 = vpow.pop %v960
        %v962 = vmul.f32 %v916, 1.442695
        %v963 = vpow.pop %v962
        %v964 = vmul.f32 %v917, 1.442695
        %v965 = vpow.pop %v964
        %v966 = vmul.f32 %v918, 1.442695
        %v967 = vpow.pop %v966
        %v968 = vmul.f32 %v919, 1.442695
        %v969 = vpow.pop %v968
        %v970 = vmul.f32 %v920, 1.442695
        %v971 = vpow.pop %v970
        %v972 = vmul.f32 %v921, 1.442695
        %v973 = vpow.pop %v972
        %v974 = vmul.f32 %v922, 1.442695
        %v975 = vpow.pop %v974
        %v976 = vmul.f32 %v923, 1.442695
        %v977 = vpow.pop %v976
        %v978 = vmul.f32 %v924, 1.442695
        %v979 = vpow.pop %v978
        %v980 = vmul.f32 %v925, 1.442695
        %v981 = vpow.pop %v980
        %v982 = vmul.f32 %v926, 1.442695
        %v983 = vpow.pop %v982
        %v984 = vmul.f32 %v927, 1.442695
        %v985 = vpow.pop %v984
        %v986 = vmul.f32 %v928, 1.442695
        %v987 = vpow.pop %v986
        %v988 = vmul.f32 %v929, 1.442695
        %v989 = vpow.pop %v988
        %v990 = vmul.f32 %v930, 1.442695
        %v991 = vpow.pop %v990
        %v992 = vmul.f32 %v931, 1.442695
        %v993 = vpow.pop %v992
        %v994 = vmul.f32 %v932, 1.442695
        %v995 = vpow.pop %v994
        %v996 = vmul.f32 %v933, 1.442695
        %v997 = vpow.pop %v996
        %v998 = vadd.f32 %v935, %v937
        %999 = vadd.xlane.f32.xlu0 %v998
        %v1000 = vpop.xlane.xlu0 %999
        %v1001 = vadd.f32 %v939, %v941
        %1002 = vadd.xlane.f32.xlu0 %v1001
        %v1003 = vpop.xlane.xlu0 %1002
        %v1004 = vadd.f32 %v943, %v945
        %1005 = vadd.xlane.f32.xlu0 %v1004
        %v1006 = vpop.xlane.xlu0 %1005
        %v1007 = vadd.f32 %v947, %v949
        %1008 = vadd.xlane.f32.xlu0 %v1007
        %v1009 = vpop.xlane.xlu0 %1008
        %v1010 = vadd.f32 %v951, %v953
        %1011 = vadd.xlane.f32.xlu0 %v1010
        %v1012 = vpop.xlane.xlu0 %1011
        %v1013 = vadd.f32 %v955, %v957
        %1014 = vadd.xlane.f32.xlu0 %v1013
        %v1015 = vpop.xlane.xlu0 %1014
        %v1016 = vadd.f32 %v959, %v961
        %1017 = vadd.xlane.f32.xlu0 %v1016
        %v1018 = vpop.xlane.xlu0 %1017
        %v1019 = vadd.f32 %v963, %v965
        %1020 = vadd.xlane.f32.xlu0 %v1019
        %v1021 = vpop.xlane.xlu0 %1020
        %v1022 = vadd.f32 %v967, %v969
        %1023 = vadd.xlane.f32.xlu0 %v1022
        %v1024 = vpop.xlane.xlu0 %1023
        %v1025 = vadd.f32 %v971, %v973
        %1026 = vadd.xlane.f32.xlu0 %v1025
        %v1027 = vpop.xlane.xlu0 %1026
        %v1028 = vadd.f32 %v975, %v977
        %1029 = vadd.xlane.f32.xlu0 %v1028
        %v1030 = vpop.xlane.xlu0 %1029
        %v1031 = vadd.f32 %v979, %v981
        %1032 = vadd.xlane.f32.xlu0 %v1031
        %v1033 = vpop.xlane.xlu0 %1032
        %v1034 = vadd.f32 %v983, %v985
        %1035 = vadd.xlane.f32.xlu0 %v1034
        %v1036 = vpop.xlane.xlu0 %1035
        %v1037 = vadd.f32 %v987, %v989
        %1038 = vadd.xlane.f32.xlu0 %v1037
        %v1039 = vpop.xlane.xlu0 %1038
        %v1040 = vadd.f32 %v991, %v993
        %1041 = vadd.xlane.f32.xlu0 %v1040
        %v1042 = vpop.xlane.xlu0 %1041
        %v1043 = vadd.f32 %v995, %v997
        %1044 = vadd.xlane.f32.xlu0 %v1043
        %v1045 = vpop.xlane.xlu0 %1044
        %v1046 = vrcp.pop %v1000
        %v1047 = vrcp.pop %v1003
        %v1048 = vrcp.pop %v1006
        %v1049 = vrcp.pop %v1009
        %v1050 = vrcp.pop %v1012
        %v1051 = vrcp.pop %v1015
        %v1052 = vrcp.pop %v1018
        %v1053 = vrcp.pop %v1021
        %v1054 = vrcp.pop %v1024
        %v1055 = vrcp.pop %v1027
        %v1056 = vrcp.pop %v1030
        %v1057 = vrcp.pop %v1033
        %v1058 = vrcp.pop %v1036
        %v1059 = vrcp.pop %v1039
        %v1060 = vrcp.pop %v1042
        %v1061 = vrcp.pop %v1045
        %v1062 = vmul.f32 %v935, %v1046
        %v1063 = vmul.f32 %v937, %v1046
        %v1064 = vmul.f32 %v939, %v1047
        %v1065 = vmul.f32 %v941, %v1047
        %v1066 = vmul.f32 %v943, %v1048
        %v1067 = vmul.f32 %v945, %v1048
        %v1068 = vmul.f32 %v947, %v1049
        %v1069 = vmul.f32 %v949, %v1049
        %v1070 = vmul.f32 %v951, %v1050
        %v1071 = vmul.f32 %v953, %v1050
        %v1072 = vmul.f32 %v955, %v1051
        %v1073 = vmul.f32 %v957, %v1051
        %v1074 = vmul.f32 %v959, %v1052
        %v1075 = vmul.f32 %v961, %v1052
        %v1076 = vmul.f32 %v963, %v1053
        %v1077 = vmul.f32 %v965, %v1053
        %v1078 = vmul.f32 %v967, %v1054
        %v1079 = vmul.f32 %v969, %v1054
        %v1080 = vmul.f32 %v971, %v1055
        %v1081 = vmul.f32 %v973, %v1055
        %v1082 = vmul.f32 %v975, %v1056
        %v1083 = vmul.f32 %v977, %v1056
        %v1084 = vmul.f32 %v979, %v1057
        %v1085 = vmul.f32 %v981, %v1057
        %v1086 = vmul.f32 %v983, %v1058
        %v1087 = vmul.f32 %v985, %v1058
        %v1088 = vmul.f32 %v987, %v1059
        %v1089 = vmul.f32 %v989, %v1059
        %v1090 = vmul.f32 %v991, %v1060
        %v1091 = vmul.f32 %v993, %v1060
        %v1092 = vmul.f32 %v995, %v1061
        %v1093 = vmul.f32 %v997, %v1061
        %v1094 = vpack.c.bf16 %v1064, %v1062
        %v1095 = vpack.c.bf16 %v1065, %v1063
        %v1096 = vpack.c.bf16 %v1068, %v1066
        %v1097 = vpack.c.bf16 %v1069, %v1067
        %v1098 = vpack.c.bf16 %v1072, %v1070
        %v1099 = vpack.c.bf16 %v1073, %v1071
        %v1100 = vpack.c.bf16 %v1076, %v1074
        %v1101 = vpack.c.bf16 %v1077, %v1075
        %v1102 = vpack.c.bf16 %v1080, %v1078
        %v1103 = vpack.c.bf16 %v1081, %v1079
        %v1104 = vpack.c.bf16 %v1084, %v1082
        %v1105 = vpack.c.bf16 %v1085, %v1083
        %v1106 = vpack.c.bf16 %v1088, %v1086
        %v1107 = vpack.c.bf16 %v1089, %v1087
        %v1108 = vpack.c.bf16 %v1092, %v1090
        %v1109 = vpack.c.bf16 %v1093, %v1091
        %v1110 = vld [vmem:[#allocation3] sm:$0xff]
        %v1111 = vld [vmem:[#allocation3 + $0x8] sm:$0xff]
        %1112 = vmatprep.subr.bf16.mxu0 %v1095
        %1113 = vmatpush1.bf16.xpose.msra.mxu0 %v1094
        %1114 = vmatprep.subr.bf16.mxu0 %v1097
        %1115 = vmatpush1.bf16.xpose.msra.mxu0 %v1096
        %1116 = vmatprep.subr.bf16.mxu0 %v1099
        %1117 = vmatpush1.bf16.xpose.msra.mxu0 %v1098
        %1118 = vmatprep.subr.bf16.mxu0 %v1101
        %1119 = vmatpush1.bf16.xpose.msra.mxu0 %v1100
        %1120 = vmatprep.subr.bf16.mxu0 %v1103
        %1121 = vmatpush1.bf16.xpose.msra.mxu0 %v1102
        %1122 = vmatprep.subr.bf16.mxu0 %v1105
        %1123 = vmatpush1.bf16.xpose.msra.mxu0 %v1104
        %1124 = vmatprep.subr.bf16.mxu0 %v1107
        %1125 = vmatpush1.bf16.xpose.msra.mxu0 %v1106
        %1126 = vmatprep.subr.bf16.mxu0 %v1109
        %1127 = vmatpush1.bf16.xpose.msra.mxu0 %v1108
        %1128 = vmatprep.subr.bf16.mxu0 0
        %1129 = vmatpush1.bf16.xpose.msra.mxu0 0
        %1130 = vmatprep.subr.bf16.mxu0 0
        %1131 = vmatpush1.bf16.xpose.msra.mxu0 0
        %1132 = vmatprep.subr.bf16.mxu0 0
        %1133 = vmatpush1.bf16.xpose.msra.mxu0 0
        %1134 = vmatprep.subr.bf16.mxu0 0
        %1135 = vmatpush1.bf16.xpose.msra.mxu0 0
        %1136 = vmatprep.subr.bf16.mxu0 0
        %1137 = vmatpush1.bf16.xpose.msra.mxu0 0
        %1138 = vmatprep.subr.bf16.mxu0 0
        %1139 = vmatpush1.bf16.xpose.msra.mxu0 0
        %1140 = vmatprep.subr.bf16.mxu0 0
        %1141 = vmatpush1.bf16.xpose.msra.mxu0 0
        %1142 = vmatprep.subr.bf16.mxu0 0
        %1143 = vmatpush1.bf16.xpose.msra.mxu0 0
        %1144 = vmatprep.mubr.bf16.mxu0 %v1111
        %1145 = vmatmul.mubr.bf16.gmra.mrb[0].mxu0 %v1110
        %v1146 = vpop.f32.mrb[0].mxu0
        %v1147 = vadd.f32 0.0, %v1146
        %v1148 = vpop.f32.mrb[0].mxu0
        %v1149 = vpop.f32.mrb[0].mxu0
        %v1150 = vadd.f32 0.0, %v1149
        %v1151 = vpop.f32.mrb[0].mxu0
        %1152 = vdwg.mxu0
        %s1153 = sld [smem:[#allocation4]]
        %v1154 = vstv %s1153
        %v1155 = vmul.f32 %v1154, %v1147
        %v1156 = vmul.f32 %v1154, %v1150
        %v1157 = vadd.f32 %v1155, %v521
        %v1158 = vadd.f32 %v1156, %v522
        %1159 = vst [vmem:[%s354] sm:$0xff] %v1157
        %1160 = vst [vmem:[%s354 + $0x8] sm:$0xff] %v1158
        %v1177 = vunpack.c.l.b16 %v1094
        %v1178 = vunpack.c.l.b16 %v1095
        %v1179 = vunpack.c.h.b16 %v1094
        %v1180 = vunpack.c.h.b16 %v1095
        %v1181 = vunpack.c.l.b16 %v1096
        %v1182 = vunpack.c.l.b16 %v1097
        %v1183 = vunpack.c.h.b16 %v1096
        %v1184 = vunpack.c.h.b16 %v1097
        %v1185 = vunpack.c.l.b16 %v1098
        %v1186 = vunpack.c.l.b16 %v1099
        %v1187 = vunpack.c.h.b16 %v1098
        %v1188 = vunpack.c.h.b16 %v1099
        %v1189 = vunpack.c.l.b16 %v1100
        %v1190 = vunpack.c.l.b16 %v1101
        %v1191 = vunpack.c.h.b16 %v1100
        %v1192 = vunpack.c.h.b16 %v1101
        %v1193 = vunpack.c.l.b16 %v1102
        %v1194 = vunpack.c.l.b16 %v1103
        %v1195 = vunpack.c.h.b16 %v1102
        %v1196 = vunpack.c.h.b16 %v1103
        %v1197 = vunpack.c.l.b16 %v1104
        %v1198 = vunpack.c.l.b16 %v1105
        %v1199 = vunpack.c.h.b16 %v1104
        %v1200 = vunpack.c.h.b16 %v1105
        %v1201 = vunpack.c.l.b16 %v1106
        %v1202 = vunpack.c.l.b16 %v1107
        %v1203 = vunpack.c.h.b16 %v1106
        %v1204 = vunpack.c.h.b16 %v1107
        %v1205 = vunpack.c.l.b16 %v1108
        %v1206 = vunpack.c.l.b16 %v1109
        %v1207 = vunpack.c.h.b16 %v1108
        %v1208 = vunpack.c.h.b16 %v1109
        %v1209 = vpack.c.b16 %v1178, %v1177
        %v1210 = vpack.c.b16 %v1180, %v1179
        %v1211 = vpack.c.b16 %v1182, %v1181
        %v1212 = vpack.c.b16 %v1184, %v1183
        %v1213 = vpack.c.b16 %v1186, %v1185
        %v1214 = vpack.c.b16 %v1188, %v1187
        %v1215 = vpack.c.b16 %v1190, %v1189
        %v1216 = vpack.c.b16 %v1192, %v1191
        %v1217 = vpack.c.b16 %v1194, %v1193
        %v1218 = vpack.c.b16 %v1196, %v1195
        %v1219 = vpack.c.b16 %v1198, %v1197
        %v1220 = vpack.c.b16 %v1200, %v1199
        %v1221 = vpack.c.b16 %v1202, %v1201
        %v1222 = vpack.c.b16 %v1204, %v1203
        %v1223 = vpack.c.b16 %v1206, %v1205
        %v1224 = vpack.c.b16 %v1208, %v1207
        %1241 = vst [vmem:[%s361] sm:$0xff] %v1209
        %1242 = vst [vmem:[%s361 + $0x8] sm:$0xff] %v1210
        %1243 = vst [vmem:[%s361 + $0x10] sm:$0xff] %v1211
        %1244 = vst [vmem:[%s361 + $0x18] sm:$0xff] %v1212
        %1245 = vst [vmem:[%s361 + $0x20] sm:$0xff] %v1213
        %1246 = vst [vmem:[%s361 + $0x28] sm:$0xff] %v1214
        %1247 = vst [vmem:[%s361 + $0x30] sm:$0xff] %v1215
        %1248 = vst [vmem:[%s361 + $0x38] sm:$0xff] %v1216
        %1249 = vst [vmem:[%s361 + $0x40] sm:$0xff] %v1217
        %1250 = vst [vmem:[%s361 + $0x48] sm:$0xff] %v1218
        %1251 = vst [vmem:[%s361 + $0x50] sm:$0xff] %v1219
        %1252 = vst [vmem:[%s361 + $0x58] sm:$0xff] %v1220
        %1253 = vst [vmem:[%s361 + $0x60] sm:$0xff] %v1221
        %1254 = vst [vmem:[%s361 + $0x68] sm:$0xff] %v1222
        %1255 = vst [vmem:[%s361 + $0x70] sm:$0xff] %v1223
        %1256 = vst [vmem:[%s361 + $0x78] sm:$0xff] %v1224
        %s1257 = sand.u32 %s224, 1
        %s1258 = scalar_lea.sflag [#allocation7], %s1257
        %s1259 = sand.u32 %s224, 1
        %s1260 = smul.addr %s1259, 16
        %s1261 = scalar_lea.vmem [#allocation8], %s1260
        %s1262 = sand.u32 %s252, 1
        %s1263 = scalar_lea.sflag [#allocation10], %s1262
        %s1264 = sand.u32 %s252, 1
        %s1265 = smul.addr %s1264, 128
        %s1266 = scalar_lea.vmem [#allocation9], %s1265
        // Predicated region
        $region61: #{tpu_custom_call.1} parent=51 // pred_check
          %p1267 = pneg %p234
        $region62: #{tpu_custom_call.1} parent=51 // pred_check_branch
          %1269 = sbr.rel (%p1267) target = $region64
        $region63: #{tpu_custom_call.1} parent=51 // pred_region
          %s1271 = ssub.s32 256, 256
          %1272 = vsyncadd %s1258, %s1271
          %s1273 = smul.addr %s33, 4
          %s1274 = sadd.s32 %s34, %s1273
          %s1275 = smul.addr %s1274, 128
          %s1276 = scalar_lea.hbm %s8, %s1275
          %s1277 = sshll.u32 %s1261, 4
          %s1278 = int_to_ptr.vmem [resolvable:$true] %s1277
          %1283 = dma.vmem_to_hbm [thread:$0]  %s1278, 256, %s1276, %s1258, 128, 256, 8
        $region64: #{tpu_custom_call.1} parent=51 // pred_fallthru
          _
        // Predicated region
        $region65: #{tpu_custom_call.1} parent=51 // pred_check
          %p1284 = pneg %p262
        $region66: #{tpu_custom_call.1} parent=51 // pred_check_branch
          %1286 = sbr.rel (%p1284) target = $region68
        $region67: #{tpu_custom_call.1} parent=51 // pred_region
          %s1287 = smul.u32 16, %s34
          %s1289 = ssub.s32 2048, 2048
          %1290 = vsyncadd %s1263, %s1289
          %s1291 = smul.addr %s1287, 2
          %s1292 = smul.addr %s33, 64
          %s1293 = sadd.s32 %s1291, %s1292
          %s1294 = smul.addr %s1293, 64
          %s1295 = scalar_lea.hbm %s9, %s1294
          %s1296 = sshll.u32 %s1266, 4
          %s1297 = int_to_ptr.vmem [resolvable:$true] %s1296
          %1302 = dma.vmem_to_hbm [thread:$0]  %s1297, 2048, %s1295, %s1263, 128, 128, 8
        $region68: #{tpu_custom_call.1} parent=51 // pred_fallthru
          _
      $region52: #{tpu_custom_call.1} parent=5 // pred_fallthru
        _
      %p1303 = scmp.le.s32.totalorder 2, %s24
      // Predicated region
      $region69: #{tpu_custom_call.1} parent=5 // pred_check
        %p1304 = pneg %p1303
      $region70: #{tpu_custom_call.1} parent=5 // pred_check_branch
        %1306 = sbr.rel (%p1304) target = $region72
      $region71: #{tpu_custom_call.1} parent=5 // pred_region
        %s1307 = ssub.s32 %s24, 2
        // Predicated region
        $region73: #{tpu_custom_call.1} parent=71 // pred_check
          %p1308 = pneg %p240
        $region74: #{tpu_custom_call.1} parent=71 // pred_check_branch
          %1310 = sbr.rel (%p1308) target = $region76
        $region75: #{tpu_custom_call.1} parent=71 // pred_region
          %s1311 = sand.u32 %s225, 1
          %s1312 = scalar_lea.sflag [#allocation7], %s1311
          %s1313 = sand.u32 %s225, 1
          %s1314 = smul.addr %s1313, 16
          %s1315 = scalar_lea.vmem [#allocation8], %s1314
          %1316 = dma.done %s1312, 256
        $region76: #{tpu_custom_call.1} parent=71 // pred_fallthru
          _
        // Predicated region
        $region77: #{tpu_custom_call.1} parent=71 // pred_check
          %p1317 = pneg %p268
        $region78: #{tpu_custom_call.1} parent=71 // pred_check_branch
          %1319 = sbr.rel (%p1317) target = $region80
        $region79: #{tpu_custom_call.1} parent=71 // pred_region
          %s1320 = sand.u32 %s253, 1
          %s1321 = scalar_lea.sflag [#allocation10], %s1320
          %s1322 = sand.u32 %s253, 1
          %s1323 = smul.addr %s1322, 128
          %s1324 = scalar_lea.vmem [#allocation9], %s1323
          %1325 = dma.done %s1321, 2048
        $region80: #{tpu_custom_call.1} parent=71 // pred_fallthru
          _
      $region72: #{tpu_custom_call.1} parent=5 // pred_fallthru
        _
    $region6: #{tpu_custom_call.1} parent=1 // loop_footer
      %s28 = sadd.s32 1, %s24
    $region7: #{tpu_custom_call.1} parent=1 // loop_footer_branch
      %23 = sbr.rel target = $region3
    $region8: #{tpu_custom_call.1} parent=1 // loop_exit
      _
    %1326 = vsyncpa [#allocation6], 1
    %s1327 = scalar_lea.sflag [#allocation6], 1
    %1328 = vsyncpa %s1327, 1
    %1329 = vsyncpa [#allocation7], 1
    %s1330 = scalar_lea.sflag [#allocation7], 1
    %1331 = vsyncpa %s1330, 1
    %1332 = vsyncpa [#allocation10], 1
    %s1333 = scalar_lea.sflag [#allocation10], 1
    %1334 = vsyncpa %s1333, 1

// kernel: tpu_custom_call.1
$region0: #{tpu_custom_call.1}
  #allocation0 [shape = 'u32[]', space=smem, size = 0x4, offset = 0x4, fixed_abs, tag = 'smem constant byte address 0x4 - core index']
  #allocation1 [shape = 'u32[144,128]{1,0:T(1,128)}', space=vmem, size = 0x12000, scoped, tag = 'internal scratch']
  #allocation2 [shape = 'bf16[2,256]{1,0:T(2,128)(2,1)}', space=vmem, size = 0x400, scoped, tag = 'scratch operand']
  #allocation3 [shape = 'bf16[16,256]{1,0:T(16,128)(2,1)}', space=vmem, size = 0x2000, scoped, tag = 'scratch operand']
  #allocation4 [shape = 'f32[1,1]{1,0:T(1,128)S(6)}', space=smem, size = 0x200, scoped, tag = 'scoped memory for tpu_custom_call.1']
  %s0 = inlined_call_operand.hbm [shape: f32[2,16,256], index: 0, kind: input, shape index: {}]
  %s1 = inlined_call_operand.vmem [shape: bf16[16,2], index: 1, kind: input, shape index: {}]
  %s2 = inlined_call_operand.vmem [shape: bf16[2,16], index: 2, kind: input, shape index: {}]
  %s3 = inlined_call_operand.vmem [shape: bf16[16,16], index: 3, kind: input, shape index: {}]
  %s4 = inlined_call_operand.vmem [shape: f32[1,2], index: 4, kind: input, shape index: {}]
  %s5 = inlined_call_operand.vmem [shape: f32[2,1], index: 5, kind: input, shape index: {}]
  %s6 = inlined_call_operand.vmem [shape: f32[16,1], index: 6, kind: input, shape index: {}]
  %s7 = inlined_call_operand.<no memory space> [shape: f32[1,1], index: 7, kind: input, shape index: {}]
  %s8 = inlined_call_operand.hbm [shape: f32[2,16,256], index: 8, kind: output, shape index: {0}]
  %s9 = inlined_call_operand.hbm [shape: bf16[2,256,256], index: 9, kind: output, shape index: {1}]
  %10 = xla_tuple %s8, %s9
  %s11 = sld [smem:[#allocation0]]
  $region81: #{tpu_custom_call.1} parent=0
    _
  %s13 = ssub.s32 1, %s11
  %s14 = scalar_select 0, %s13, %s11
  %15 = sst [smem:[#allocation4]] %s7
  $region1: #{tpu_custom_call.1} parent=0
    #allocation5 [shape = 'u8[32768]{0}', space=vmem, size = 0x8000, scoped, tag = 'input window, operand 0']
    #allocation6 [shape = 's32[2]{0}', space=sflag, size = 0x8, scoped, tag = 'scoped memory for tpu_custom_call.1']
    #allocation7 [shape = 's32[2]{0}', space=sflag, size = 0x8, scoped, tag = 'scoped memory for tpu_custom_call.1']
    #allocation8 [shape = 'u8[16384]{0}', space=vmem, size = 0x4000, scoped, tag = 'output window, operand 0']
    #allocation9 [shape = 'u8[131072]{0}', space=vmem, size = 0x20000, scoped, tag = 'output window, operand 1']
    #allocation10 [shape = 's32[2]{0}', space=sflag, size = 0x8, scoped, tag = 'scoped memory for tpu_custom_call.1']
    %16 = vsyncpa [#allocation6], 0
    %s17 = scalar_lea.sflag [#allocation6], 1
    %18 = vsyncpa %s17, 0
    %19 = vsyncpa [#allocation7], 0
    %s20 = scalar_lea.sflag [#allocation7], 1
    %21 = vsyncpa %s20, 0
    %22 = vsyncpa [#allocation10], 0
    %s23 = scalar_lea.sflag [#allocation10], 1
    %24 = vsyncpa %s23, 0
    loop: start=0, step=1, limit=6
    $region2: #{tpu_custom_call.1} parent=1 // loop_pre_header
      _
    $region3: #{tpu_custom_call.1} parent=1 // loop_header
      %s26 = sphi 0, %s30
      %p27 = scmp.ge.s32.totalorder %s26, 6
      %s33 = sphi 0, %s45
      %s34 = sphi 0, %s41
      %s35 = sphi 0, %s33
      %s36 = sphi 0, %s34
      %s37 = sphi 0, %s35
      %s38 = sphi 0, %s36
      %s48 = sphi 0, %s50
      %s51 = sphi 0, %s48
      %s52 = sphi 0, %s51
      %s68 = sphi 0, %s52
      %s72 = sphi 0, %s72
      %s74 = sphi 0, %s72
      %s75 = sphi 0, %s74
      %s89 = sphi 0, %s75
      %s93 = sphi 0, %s93
      %s95 = sphi 0, %s93
      %s96 = sphi 0, %s95
      %s110 = sphi 0, %s96
      %s114 = sphi 0, %s114
      %s116 = sphi 0, %s114
      %s117 = sphi 0, %s116
      %s131 = sphi 0, %s117
      %s135 = sphi 0, %s135
      %s137 = sphi 0, %s135
      %s138 = sphi 0, %s137
      %s152 = sphi 0, %s138
      %s156 = sphi 0, %s156
      %s158 = sphi 0, %s156
      %s159 = sphi 0, %s158
      %s173 = sphi 0, %s159
      %s177 = sphi 0, %s177
      %s179 = sphi 0, %s177
      %s180 = sphi 0, %s179
      %s194 = sphi 0, %s180
      %s198 = sphi 0, %s198
      %s200 = sphi 0, %s198
      %s201 = sphi 0, %s200
      %s215 = sphi 0, %s201
      %s223 = sphi 0, %s225
      %s226 = sphi 0, %s223
      %s227 = sphi 0, %s226
      %s243 = sphi 0, %s227
      %s251 = sphi 0, %s253
      %s254 = sphi 0, %s251
      %s255 = sphi 0, %s254
      %s271 = sphi 0, %s255
    $region4: #{tpu_custom_call.1} parent=1 // loop_header_branch
      %29 = sbr.rel (%p27) target = $region8
    $region5: #{tpu_custom_call.1} parent=1 // loop_body
      %s31 = ssub.s32 %s26, 1
      %s32 = ssub.s32 %s26, 2
      %s39 = sadd.s32 1, %s34
      %p40 = scmp.ge.s32.totalorder %s39, 2
      %s41 = scalar_select %p40, 0, %s39
      %s42 = sadd.s32 1, %s33
      %s43 = scalar_select %p40, %s42, %s33
      %p44 = scmp.ge.s32.totalorder %s43, 2
      %s45 = scalar_select %p44, 0, %s43
      %s46 = ssub.s32 %s33, %s45
      %p47 = scmp.eq.s32.totalorder %s46, 0
      %s49 = sadd.s32 %s48, 1
      %s50 = scalar_select %p47, %s48, %s49
      %p53 = pneg %p47
      %p54 = scmp.eq.s32.totalorder %s26, 3
      %p55 = por %p53, %p54
      %p56 = scmp.ne.s32.totalorder %s48, %s51
      %p57 = scmp.eq.s32.totalorder %s26, 0
      %p58 = por %p56, %p57
      %p59 = scmp.ne.s32.totalorder %s48, %s51
      %p60 = scmp.eq.s32.totalorder %s31, 3
      %p61 = por %p59, %p60
      %p62 = scmp.ne.s32.totalorder %s51, %s52
      %p63 = scmp.eq.s32.totalorder %s31, 0
      %p64 = por %p62, %p63
      %p65 = scmp.ne.s32.totalorder %s51, %s52
      %p66 = scmp.eq.s32.totalorder %s32, 3
      %p67 = por %p65, %p66
      %p69 = scmp.ne.s32.totalorder %s52, %s68
      %p70 = scmp.eq.s32.totalorder %s32, 0
      %p71 = por %p69, %p70
      %s73 = sadd.s32 %s72, 1
      %p76 = scmp.eq.s32.totalorder %s26, 3
      %p77 = scmp.ne.s32.totalorder %s72, %s74
      %p78 = scmp.eq.s32.totalorder %s26, 0
      %p79 = por %p77, %p78
      %p80 = scmp.ne.s32.totalorder %s72, %s74
      %p81 = scmp.eq.s32.totalorder %s31, 3
      %p82 = por %p80, %p81
      %p83 = scmp.ne.s32.totalorder %s74, %s75
      %p84 = scmp.eq.s32.totalorder %s31, 0
      %p85 = por %p83, %p84
      %p86 = scmp.ne.s32.totalorder %s74, %s75
      %p87 = scmp.eq.s32.totalorder %s32, 3
      %p88 = por %p86, %p87
      %p90 = scmp.ne.s32.totalorder %s75, %s89
      %p91 = scmp.eq.s32.totalorder %s32, 0
      %p92 = por %p90, %p91
      %s94 = sadd.s32 %s93, 1
      %p97 = scmp.eq.s32.totalorder %s26, 3
      %p98 = scmp.ne.s32.totalorder %s93, %s95
      %p99 = scmp.eq.s32.totalorder %s26, 0
      %p100 = por %p98, %p99
      %p101 = scmp.ne.s32.totalorder %s93, %s95
      %p102 = scmp.eq.s32.totalorder %s31, 3
      %p103 = por %p101, %p102
      %p104 = scmp.ne.s32.totalorder %s95, %s96
      %p105 = scmp.eq.s32.totalorder %s31, 0
      %p106 = por %p104, %p105
      %p107 = scmp.ne.s32.totalorder %s95, %s96
      %p108 = scmp.eq.s32.totalorder %s32, 3
      %p109 = por %p107, %p108
      %p111 = scmp.ne.s32.totalorder %s96, %s110
      %p112 = scmp.eq.s32.totalorder %s32, 0
      %p113 = por %p111, %p112
      %s115 = sadd.s32 %s114, 1
      %p118 = scmp.eq.s32.totalorder %s26, 3
      %p119 = scmp.ne.s32.totalorder %s114, %s116
      %p120 = scmp.eq.s32.totalorder %s26, 0
      %p121 = por %p119, %p120
      %p122 = scmp.ne.s32.totalorder %s114, %s116
      %p123 = scmp.eq.s32.totalorder %s31, 3
      %p124 = por %p122, %p123
      %p125 = scmp.ne.s32.totalorder %s116, %s117
      %p126 = scmp.eq.s32.totalorder %s31, 0
      %p127 = por %p125, %p126
      %p128 = scmp.ne.s32.totalorder %s116, %s117
      %p129 = scmp.eq.s32.totalorder %s32, 3
      %p130 = por %p128, %p129
      %p132 = scmp.ne.s32.totalorder %s117, %s131
      %p133 = scmp.eq.s32.totalorder %s32, 0
      %p134 = por %p132, %p133
      %s136 = sadd.s32 %s135, 1
      %p139 = scmp.eq.s32.totalorder %s26, 3
      %p140 = scmp.ne.s32.totalorder %s135, %s137
      %p141 = scmp.eq.s32.totalorder %s26, 0
      %p142 = por %p140, %p141
      %p143 = scmp.ne.s32.totalorder %s135, %s137
      %p144 = scmp.eq.s32.totalorder %s31, 3
      %p145 = por %p143, %p144
      %p146 = scmp.ne.s32.totalorder %s137, %s138
      %p147 = scmp.eq.s32.totalorder %s31, 0
      %p148 = por %p146, %p147
      %p149 = scmp.ne.s32.totalorder %s137, %s138
      %p150 = scmp.eq.s32.totalorder %s32, 3
      %p151 = por %p149, %p150
      %p153 = scmp.ne.s32.totalorder %s138, %s152
      %p154 = scmp.eq.s32.totalorder %s32, 0
      %p155 = por %p153, %p154
      %s157 = sadd.s32 %s156, 1
      %p160 = scmp.eq.s32.totalorder %s26, 3
      %p161 = scmp.ne.s32.totalorder %s156, %s158
      %p162 = scmp.eq.s32.totalorder %s26, 0
      %p163 = por %p161, %p162
      %p164 = scmp.ne.s32.totalorder %s156, %s158
      %p165 = scmp.eq.s32.totalorder %s31, 3
      %p166 = por %p164, %p165
      %p167 = scmp.ne.s32.totalorder %s158, %s159
      %p168 = scmp.eq.s32.totalorder %s31, 0
      %p169 = por %p167, %p168
      %p170 = scmp.ne.s32.totalorder %s158, %s159
      %p171 = scmp.eq.s32.totalorder %s32, 3
      %p172 = por %p170, %p171
      %p174 = scmp.ne.s32.totalorder %s159, %s173
      %p175 = scmp.eq.s32.totalorder %s32, 0
      %p176 = por %p174, %p175
      %s178 = sadd.s32 %s177, 1
      %p181 = scmp.eq.s32.totalorder %s26, 3
      %p182 = scmp.ne.s32.totalorder %s177, %s179
      %p183 = scmp.eq.s32.totalorder %s26, 0
      %p184 = por %p182, %p183
      %p185 = scmp.ne.s32.totalorder %s177, %s179
      %p186 = scmp.eq.s32.totalorder %s31, 3
      %p187 = por %p185, %p186
      %p188 = scmp.ne.s32.totalorder %s179, %s180
      %p189 = scmp.eq.s32.totalorder %s31, 0
      %p190 = por %p188, %p189
      %p191 = scmp.ne.s32.totalorder %s179, %s180
      %p192 = scmp.eq.s32.totalorder %s32, 3
      %p193 = por %p191, %p192
      %p195 = scmp.ne.s32.totalorder %s180, %s194
      %p196 = scmp.eq.s32.totalorder %s32, 0
      %p197 = por %p195, %p196
      %s199 = sadd.s32 %s198, 1
      %p202 = scmp.eq.s32.totalorder %s26, 3
      %p203 = scmp.ne.s32.totalorder %s198, %s200
      %p204 = scmp.eq.s32.totalorder %s26, 0
      %p205 = por %p203, %p204
      %p206 = scmp.ne.s32.totalorder %s198, %s200
      %p207 = scmp.eq.s32.totalorder %s31, 3
      %p208 = por %p206, %p207
      %p209 = scmp.ne.s32.totalorder %s200, %s201
      %p210 = scmp.eq.s32.totalorder %s31, 0
      %p211 = por %p209, %p210
      %p212 = scmp.ne.s32.totalorder %s200, %s201
      %p213 = scmp.eq.s32.totalorder %s32, 3
      %p214 = por %p212, %p213
      %p216 = scmp.ne.s32.totalorder %s201, %s215
      %p217 = scmp.eq.s32.totalorder %s32, 0
      %p218 = por %p216, %p217
      %s219 = ssub.s32 %s33, %s45
      %s220 = ssub.s32 %s34, %s41
      %s221 = sor.u32 %s219, %s220
      %p222 = scmp.eq.s32.totalorder %s221, 0
      %s224 = sadd.s32 %s223, 1
      %s225 = scalar_select %p222, %s223, %s224
      %p228 = pneg %p222
      %p229 = scmp.eq.s32.totalorder %s26, 3
      %p230 = por %p228, %p229
      %p231 = scmp.ne.s32.totalorder %s223, %s226
      %p232 = scmp.eq.s32.totalorder %s26, 0
      %p233 = por %p231, %p232
      %p234 = scmp.ne.s32.totalorder %s223, %s226
      %p235 = scmp.eq.s32.totalorder %s31, 3
      %p236 = por %p234, %p235
      %p237 = scmp.ne.s32.totalorder %s226, %s227
      %p238 = scmp.eq.s32.totalorder %s31, 0
      %p239 = por %p237, %p238
      %p240 = scmp.ne.s32.totalorder %s226, %s227
      %p241 = scmp.eq.s32.totalorder %s32, 3
      %p242 = por %p240, %p241
      %p244 = scmp.ne.s32.totalorder %s227, %s243
      %p245 = scmp.eq.s32.totalorder %s32, 0
      %p246 = por %p244, %p245
      %s247 = ssub.s32 %s33, %s45
      %s248 = ssub.s32 %s34, %s41
      %s249 = sor.u32 %s247, %s248
      %p250 = scmp.eq.s32.totalorder %s249, 0
      %s252 = sadd.s32 %s251, 1
      %s253 = scalar_select %p250, %s251, %s252
      %p256 = pneg %p250
      %p257 = scmp.eq.s32.totalorder %s26, 3
      %p258 = por %p256, %p257
      %p259 = scmp.ne.s32.totalorder %s251, %s254
      %p260 = scmp.eq.s32.totalorder %s26, 0
      %p261 = por %p259, %p260
      %p262 = scmp.ne.s32.totalorder %s251, %s254
      %p263 = scmp.eq.s32.totalorder %s31, 3
      %p264 = por %p262, %p263
      %p265 = scmp.ne.s32.totalorder %s254, %s255
      %p266 = scmp.eq.s32.totalorder %s31, 0
      %p267 = por %p265, %p266
      %p268 = scmp.ne.s32.totalorder %s254, %s255
      %p269 = scmp.eq.s32.totalorder %s32, 3
      %p270 = por %p268, %p269
      %p272 = scmp.ne.s32.totalorder %s255, %s271
      %p273 = scmp.eq.s32.totalorder %s32, 0
      %p274 = por %p272, %p273
      %p275 = scmp.le.s32.totalorder 1, %s26
      %p276 = scmp.lt.s32.totalorder %s26, 5
      %p277 = pnand %p275, %p276
      %p278 = pneg %p277
      // Predicated region
      $region9: #{tpu_custom_call.1} parent=5 // pred_check
        _
      $region10: #{tpu_custom_call.1} parent=5 // pred_check_branch
        %280 = sbr.rel (%p277) target = $region12
      $region11: #{tpu_custom_call.1} parent=5 // pred_region
        %s281 = ssub.s32 %s26, 1
        // Predicated region
        $region13: #{tpu_custom_call.1} parent=11 // pred_check
          %p282 = pneg %p85
        $region14: #{tpu_custom_call.1} parent=11 // pred_check_branch
          %284 = sbr.rel (%p282) target = $region16
        $region15: #{tpu_custom_call.1} parent=11 // pred_region
          _
        $region16: #{tpu_custom_call.1} parent=11 // pred_fallthru
          _
        // Predicated region
        $region17: #{tpu_custom_call.1} parent=11 // pred_check
          %p285 = pneg %p106
        $region18: #{tpu_custom_call.1} parent=11 // pred_check_branch
          %287 = sbr.rel (%p285) target = $region20
        $region19: #{tpu_custom_call.1} parent=11 // pred_region
          _
        $region20: #{tpu_custom_call.1} parent=11 // pred_fallthru
          _
        // Predicated region
        $region21: #{tpu_custom_call.1} parent=11 // pred_check
          %p288 = pneg %p127
        $region22: #{tpu_custom_call.1} parent=11 // pred_check_branch
          %290 = sbr.rel (%p288) target = $region24
        $region23: #{tpu_custom_call.1} parent=11 // pred_region
          _
        $region24: #{tpu_custom_call.1} parent=11 // pred_fallthru
          _
        // Predicated region
        $region25: #{tpu_custom_call.1} parent=11 // pred_check
          %p291 = pneg %p148
        $region26: #{tpu_custom_call.1} parent=11 // pred_check_branch
          %293 = sbr.rel (%p291) target = $region28
        $region27: #{tpu_custom_call.1} parent=11 // pred_region
          _
        $region28: #{tpu_custom_call.1} parent=11 // pred_fallthru
          _
        // Predicated region
        $region29: #{tpu_custom_call.1} parent=11 // pred_check
          %p294 = pneg %p169
        $region30: #{tpu_custom_call.1} parent=11 // pred_check_branch
          %296 = sbr.rel (%p294) target = $region32
        $region31: #{tpu_custom_call.1} parent=11 // pred_region
          _
        $region32: #{tpu_custom_call.1} parent=11 // pred_fallthru
          _
        // Predicated region
        $region33: #{tpu_custom_call.1} parent=11 // pred_check
          %p297 = pneg %p190
        $region34: #{tpu_custom_call.1} parent=11 // pred_check_branch
          %299 = sbr.rel (%p297) target = $region36
        $region35: #{tpu_custom_call.1} parent=11 // pred_region
          _
        $region36: #{tpu_custom_call.1} parent=11 // pred_fallthru
          _
        // Predicated region
        $region37: #{tpu_custom_call.1} parent=11 // pred_check
          %p300 = pneg %p211
        $region38: #{tpu_custom_call.1} parent=11 // pred_check_branch
          %302 = sbr.rel (%p300) target = $region40
        $region39: #{tpu_custom_call.1} parent=11 // pred_region
          _
        $region40: #{tpu_custom_call.1} parent=11 // pred_fallthru
          _
      $region12: #{tpu_custom_call.1} parent=5 // pred_fallthru
        _
      %p303 = scmp.lt.s32.totalorder %s26, 4
      // Predicated region
      $region41: #{tpu_custom_call.1} parent=5 // pred_check
        %p304 = pneg %p303
      $region42: #{tpu_custom_call.1} parent=5 // pred_check_branch
        %306 = sbr.rel (%p304) target = $region44
      $region43: #{tpu_custom_call.1} parent=5 // pred_region
        // Predicated region
        $region45: #{tpu_custom_call.1} parent=43 // pred_check
          %p307 = pneg %p58
        $region46: #{tpu_custom_call.1} parent=43 // pred_check_branch
          %309 = sbr.rel (%p307) target = $region48
        $region47: #{tpu_custom_call.1} parent=43 // pred_region
          %s310 = sand.u32 %s48, 1
          %s311 = scalar_lea.sflag [#allocation6], %s310
          %s312 = sand.u32 %s48, 1
          %s313 = smul.addr %s312, 32
          %s314 = scalar_lea.vmem [#allocation5], %s313
          %s316 = ssub.s32 512, 512
          %317 = vsyncadd %s311, %s316
          %s318 = smul.addr %s33, 4
          %s319 = smul.addr %s318, 128
          %s320 = scalar_lea.hbm %s0, %s319
          %s321 = sshll.u32 %s314, 4
          %s322 = int_to_ptr.vmem [resolvable:$true] %s321
          %327 = dma.hbm_to_vmem [thread:$0]  %s320, 512, %s322, %s311, 256, 256, 16
        $region48: #{tpu_custom_call.1} parent=43 // pred_fallthru
          _
      $region44: #{tpu_custom_call.1} parent=5 // pred_fallthru
        _
      %p328 = scmp.le.s32.totalorder 1, %s26
      %p329 = scmp.lt.s32.totalorder %s26, 5
      %p330 = pnand %p328, %p329
      %p331 = pneg %p330
      // Predicated region
      $region49: #{tpu_custom_call.1} parent=5 // pred_check
        _
      $region50: #{tpu_custom_call.1} parent=5 // pred_check_branch
        %333 = sbr.rel (%p330) target = $region52
      $region51: #{tpu_custom_call.1} parent=5 // pred_region
        %s334 = ssub.s32 %s26, 1
        %s335 = sand.u32 %s51, 1
        %s336 = scalar_lea.sflag [#allocation6], %s335
        %s337 = sand.u32 %s51, 1
        %s338 = smul.addr %s337, 32
        %s339 = scalar_lea.vmem [#allocation5], %s338
        // Predicated region
        $region53: #{tpu_custom_call.1} parent=51 // pred_check
          %p340 = pneg %p64
        $region54: #{tpu_custom_call.1} parent=51 // pred_check_branch
          %342 = sbr.rel (%p340) target = $region56
        $region55: #{tpu_custom_call.1} parent=51 // pred_region
          %343 = dma.done %s336, 512
        $region56: #{tpu_custom_call.1} parent=51 // pred_fallthru
          _
        %s344 = sand.u32 %s51, 1
        %s345 = scalar_lea.sflag [#allocation6], %s344
        %s346 = sand.u32 %s51, 1
        %s347 = smul.addr %s346, 32
        %s348 = scalar_lea.vmem [#allocation5], %s347
        %p349 = pneg %p64
        %p350 = pneg %p61
        %p351 = pneg %p85
        %p352 = pneg %p82
        %p353 = pneg %p106
        %p354 = pneg %p103
        %p355 = pneg %p127
        %p356 = pneg %p124
        %p357 = pneg %p148
        %p358 = pneg %p145
        %p359 = pneg %p169
        %p360 = pneg %p166
        %p361 = pneg %p190
        %p362 = pneg %p187
        %p363 = pneg %p211
        %p364 = pneg %p208
        %p365 = pneg %p239
        %p366 = pneg %p236
        %s367 = sand.u32 %s226, 1
        %s368 = scalar_lea.sflag [#allocation7], %s367
        %s369 = sand.u32 %s226, 1
        %s370 = smul.addr %s369, 16
        %s371 = scalar_lea.vmem [#allocation8], %s370
        %p372 = pneg %p267
        %p373 = pneg %p264
        %s374 = sand.u32 %s254, 1
        %s375 = scalar_lea.sflag [#allocation10], %s374
        %s376 = sand.u32 %s254, 1
        %s377 = smul.addr %s376, 128
        %s378 = scalar_lea.vmem [#allocation9], %s377
        %s379 = smul.u32 16, %s36
        %p381 = scmp.eq.s32.totalorder %s36, 0
        // Predicated region
        $region57: #{tpu_custom_call.1} parent=51 // pred_check
          %p382 = pneg %p381
        $region58: #{tpu_custom_call.1} parent=51 // pred_check_branch
          %384 = sbr.rel (%p382) target = $region60
        $region59: #{tpu_custom_call.1} parent=51 // pred_region
          %v385 = vld [vmem:[%s339] sm:$0xff]
          %v386 = vld [vmem:[%s339 + $0x8] sm:$0xff]
          %v387 = vld [vmem:[%s339 + $0x10] sm:$0xff]
          %v388 = vld [vmem:[%s339 + $0x18] sm:$0xff]
          %v389 = vpack.c.bf16 %v387, %v385
          %v390 = vpack.c.bf16 %v388, %v386
          %v391 = vld [vmem:[%s2] sm:$0x1]
          %v392 = vld [vmem:[%s5] sm:$0x3]
          %394 = vset.pattern.permute.xlu0 0
          %395 = vperm.xlu0 %394, %v392
          %v396 = vpop.permute.xlu0 %395
          %vm398 = vcmask 130048
          %v400 = vsel %vm398, %v391, 0
          %402 = vmatprep.subr.bf16.mxu0 %v390
          %403 = vmatpush1.bf16.msra.mxu0 %v389
          %404 = vmatprep.subr.bf16.mxu0 0
          %405 = vmatpush1.bf16.msra.mxu0 0
          %406 = vmatprep.subr.bf16.mxu0 0
          %407 = vmatpush1.bf16.msra.mxu0 0
          %408 = vmatprep.subr.bf16.mxu0 0
          %409 = vmatpush1.bf16.msra.mxu0 0
          %410 = vmatprep.subr.bf16.mxu0 0
          %411 = vmatpush1.bf16.msra.mxu0 0
          %412 = vmatprep.subr.bf16.mxu0 0
          %413 = vmatpush1.bf16.msra.mxu0 0
          %414 = vmatprep.subr.bf16.mxu0 0
          %415 = vmatpush1.bf16.msra.mxu0 0
          %416 = vmatprep.subr.bf16.mxu0 0
          %417 = vmatpush1.bf16.msra.mxu0 0
          %418 = vmatprep.subr.bf16.mxu0 0
          %419 = vmatpush1.bf16.msra.mxu0 0
          %420 = vmatprep.subr.bf16.mxu0 0
          %421 = vmatpush1.bf16.msra.mxu0 0
          %422 = vmatprep.subr.bf16.mxu0 0
          %423 = vmatpush1.bf16.msra.mxu0 0
          %424 = vmatprep.subr.bf16.mxu0 0
          %425 = vmatpush1.bf16.msra.mxu0 0
          %426 = vmatprep.subr.bf16.mxu0 0
          %427 = vmatpush1.bf16.msra.mxu0 0
          %428 = vmatprep.subr.bf16.mxu0 0
          %429 = vmatpush1.bf16.msra.mxu0 0
          %430 = vmatprep.subr.bf16.mxu0 0
          %431 = vmatpush1.bf16.msra.mxu0 0
          %432 = vmatprep.subr.bf16.mxu0 0
          %433 = vmatpush1.bf16.msra.mxu0 0
          %434 = vmatprep.mubr.bf16.mxu0 0
          %435 = vmatmul.mubr.bf16.gmra.mrb[0].mxu0 %v400
          %v436 = vpop.f32.mrb[0].mxu0
          %v437 = vadd.f32 %v396, %v436
          %v438 = vpop.f32.mrb[0].mxu0
          %v439 = vadd.f32 %v396, %v438
          %v440 = vpop.f32.mrb[0].mxu0
          %v441 = vpop.f32.mrb[0].mxu0
          %442 = vdwg.mxu0
          %v443 = vld [vmem:[%s3] sm:$0xf]
          %v444 = vld [vmem:[%s3 + $0x4] sm:$0xf]
          %v445 = vld [vmem:[%s6] sm:$0xff]
          %v446 = vld [vmem:[%s6 + $0x8] sm:$0xff]
          %448 = vset.pattern.permute.xlu0 0
          %449 = vperm.xlu0 %448, %v445
          %v450 = vpop.permute.xlu0 %449
          %453 = vset.pattern.permute.xlu0 0
          %454 = vperm.xlu0 %453, %v446
          %v455 = vpop.permute.xlu0 %454
          %v459 = vunpack.c.l.b16 %v443
          %v460 = vunpack.c.l.b16 %v444
          %v461 = vpack.c.b16 %v460, %v459
          %v463 = vsel %vm398, %v461, 0
          %465 = vmatprep.subr.bf16.mxu0 %v390
          %466 = vmatpush1.bf16.msra.mxu0 %v389
          %467 = vmatprep.subr.bf16.mxu0 0
          %468 = vmatpush1.bf16.msra.mxu0 0
          %469 = vmatprep.subr.bf16.mxu0 0
          %470 = vmatpush1.bf16.msra.mxu0 0
          %471 = vmatprep.subr.bf16.mxu0 0
          %472 = vmatpush1.bf16.msra.mxu0 0
          %473 = vmatprep.subr.bf16.mxu0 0
          %474 = vmatpush1.bf16.msra.mxu0 0
          %475 = vmatprep.subr.bf16.mxu0 0
          %476 = vmatpush1.bf16.msra.mxu0 0
          %477 = vmatprep.subr.bf16.mxu0 0
          %478 = vmatpush1.bf16.msra.mxu0 0
          %479 = vmatprep.subr.bf16.mxu0 0
          %480 = vmatpush1.bf16.msra.mxu0 0
          %481 = vmatprep.subr.bf16.mxu0 0
          %482 = vmatpush1.bf16.msra.mxu0 0
          %483 = vmatprep.subr.bf16.mxu0 0
          %484 = vmatpush1.bf16.msra.mxu0 0
          %485 = vmatprep.subr.bf16.mxu0 0
          %486 = vmatpush1.bf16.msra.mxu0 0
          %487 = vmatprep.subr.bf16.mxu0 0
          %488 = vmatpush1.bf16.msra.mxu0 0
          %489 = vmatprep.subr.bf16.mxu0 0
          %490 = vmatpush1.bf16.msra.mxu0 0
          %491 = vmatprep.subr.bf16.mxu0 0
          %492 = vmatpush1.bf16.msra.mxu0 0
          %493 = vmatprep.subr.bf16.mxu0 0
          %494 = vmatpush1.bf16.msra.mxu0 0
          %495 = vmatprep.subr.bf16.mxu0 0
          %496 = vmatpush1.bf16.msra.mxu0 0
          %497 = vmatprep.mubr.bf16.mxu0 0
          %498 = vmatmul.mubr.bf16.gmra.mrb[0].mxu0 %v463
          %v499 = vpop.f32.mrb[0].mxu0
          %v500 = vadd.f32 %v450, %v499
          %v501 = vpop.f32.mrb[0].mxu0
          %v502 = vadd.f32 %v450, %v501
          %v503 = vpop.f32.mrb[0].mxu0
          %v504 = vadd.f32 %v455, %v503
          %v505 = vpop.f32.mrb[0].mxu0
          %v506 = vadd.f32 %v455, %v505
          %507 = vdwg.mxu0
          %v508 = vpack.c.bf16 %v437, %v437
          %v509 = vpack.c.bf16 %v439, %v439
          %v512 = vcombine.low %v508, %v509
          %v514 = vunpack.c.l.s4 1966171168
          %v515 = vunpack.c.0.s8 %v514
          %v516 = vlaneseq
          %v517 = vshrl.u32 %v516, 7
          %v518 = vsub.s32 %v515, %v517
          %v519 = vrot.slane %v512, %v518
          %v521 = vunpack.c.l.s4 1966171168
          %v522 = vunpack.c.0.s8 %v521
          %v523 = vlaneseq
          %v524 = vshrl.u32 %v523, 7
          %v525 = vsub.s32 %v522, %v524
          %v526 = vrot.slane %v519, %v525
          %528 = vst [vmem:[#allocation2] sm:$0x3] %v526
          %v529 = vpack.c.bf16 %v504, %v500
          %v530 = vpack.c.bf16 %v506, %v502
          %531 = vst [vmem:[#allocation3] sm:$0xff] %v529
          %532 = vst [vmem:[#allocation3 + $0x8] sm:$0xff] %v530
        $region60: #{tpu_custom_call.1} parent=51 // pred_fallthru
          _
        %s533 = smul.u32 %s36, 128
        %s534 = sshra.s32 %s533, 7
        %s535 = sand.u32 %s533, 127
        %s536 = smul.addr %s534, 8
        %s537 = scalar_lea.vmem %s339, %s536 [#allocation5]
        %v538 = vld [vmem:[%s537] sm:$0xff]
        %v539 = vld [vmem:[%s537 + $0x10] sm:$0xff]
        %v540 = vpack.c.bf16 %v539, %v538
        %v541 = vld [vmem:[%s1] sm:$0xf]
        %v542 = vld [vmem:[%s1 + $0x4] sm:$0xf]
        %v543 = vld [vmem:[%s4] sm:$0x1]
        %v545 = vlaneseq
        %v546 = vshrl.u32 %v545, 7
        %v547 = vsub.s32 0, %v546
        %v548 = vrot.slane %v543, %v547
        %550 = vxpose.xlu0.c.b16.start [1/8] %v540, 128
        %551 = vxpose.xlu0.c.b16.cont [2/8] 0, 128
        %552 = vxpose.xlu0.c.b16.cont [3/8] 0, 128
        %553 = vxpose.xlu0.c.b16.cont [4/8] 0, 128
        %554 = vxpose.xlu0.c.b16.cont [5/8] 0, 128
        %555 = vxpose.xlu0.c.b16.cont [6/8] 0, 128
        %556 = vxpose.xlu0.c.b16.cont [7/8] 0, 128
        %557 = vxpose.xlu0.c.b16.end [8/8] 0, 128
        %v558 = vpop.trf.xlu0
        %v559 = vpop.trf.xlu0
        %v560 = vpop.trf.xlu0
        %v561 = vpop.trf.xlu0
        %v562 = vpop.trf.xlu0
        %v563 = vpop.trf.xlu0
        %v564 = vpop.trf.xlu0
        %v565 = vpop.trf.xlu0
        %v568 = vunpack.c.l.b16 %v541
        %v569 = vunpack.c.l.b16 %v542
        %v570 = vpack.c.b16 %v569, %v568
        %vm572 = vcmask 130048
        %v574 = vsel %vm572, %v558, 0
        %v577 = vsel %vm572, %v559, 0
        %v580 = vsel %vm572, %v560, 0
        %v583 = vsel %vm572, %v561, 0
        %v586 = vsel %vm572, %v562, 0
        %v589 = vsel %vm572, %v563, 0
        %v592 = vsel %vm572, %v564, 0
        %v595 = vsel %vm572, %v565, 0
        %597 = vmatprep.subr.bf16.mxu0 0
        %598 = vmatpush1.bf16.msra.mxu0 %v570
        %599 = vmatprep.subr.bf16.mxu0 0
        %600 = vmatpush1.bf16.msra.mxu0 0
        %601 = vmatprep.subr.bf16.mxu0 0
        %602 = vmatpush1.bf16.msra.mxu0 0
        %603 = vmatprep.subr.bf16.mxu0 0
        %604 = vmatpush1.bf16.msra.mxu0 0
        %605 = vmatprep.subr.bf16.mxu0 0
        %606 = vmatpush1.bf16.msra.mxu0 0
        %607 = vmatprep.subr.bf16.mxu0 0
        %608 = vmatpush1.bf16.msra.mxu0 0
        %609 = vmatprep.subr.bf16.mxu0 0
        %610 = vmatpush1.bf16.msra.mxu0 0
        %611 = vmatprep.subr.bf16.mxu0 0
        %612 = vmatpush1.bf16.msra.mxu0 0
        %613 = vmatprep.subr.bf16.mxu0 0
        %614 = vmatpush1.bf16.msra.mxu0 0
        %615 = vmatprep.subr.bf16.mxu0 0
        %616 = vmatpush1.bf16.msra.mxu0 0
        %617 = vmatprep.subr.bf16.mxu0 0
        %618 = vmatpush1.bf16.msra.mxu0 0
        %619 = vmatprep.subr.bf16.mxu0 0
        %620 = vmatpush1.bf16.msra.mxu0 0
        %621 = vmatprep.subr.bf16.mxu0 0
        %622 = vmatpush1.bf16.msra.mxu0 0
        %623 = vmatprep.subr.bf16.mxu0 0
        %624 = vmatpush1.bf16.msra.mxu0 0
        %625 = vmatprep.subr.bf16.mxu0 0
        %626 = vmatpush1.bf16.msra.mxu0 0
        %627 = vmatprep.subr.bf16.mxu0 0
        %628 = vmatpush1.bf16.msra.mxu0 0
        %629 = vmatprep.mubr.bf16.mxu0 0
        %630 = vmatmul.mubr.bf16.gmra.mrb[0].mxu0 %v574
        %v631 = vpop.f32.mrb[0].mxu0
        %v632 = vadd.f32 %v548, %v631
        %v633 = vpop.f32.mrb[0].mxu0
        %v634 = vpop.f32.mrb[0].mxu0
        %v635 = vadd.f32 %v548, %v634
        %v636 = vpop.f32.mrb[0].mxu0
        %637 = vmatprep.mubr.bf16.mxu0 0
        %638 = vmatmul.mubr.bf16.gmra.mrb[0].mxu0 %v577
        %v639 = vpop.f32.mrb[0].mxu0
        %v640 = vadd.f32 %v548, %v639
        %v641 = vpop.f32.mrb[0].mxu0
        %v642 = vpop.f32.mrb[0].mxu0
        %v643 = vadd.f32 %v548, %v642
        %v644 = vpop.f32.mrb[0].mxu0
        %645 = vmatprep.mubr.bf16.mxu0 0
        %646 = vmatmul.mubr.bf16.gmra.mrb[0].mxu0 %v580
        %v647 = vpop.f32.mrb[0].mxu0
        %v648 = vadd.f32 %v548, %v647
        %v649 = vpop.f32.mrb[0].mxu0
        %v650 = vpop.f32.mrb[0].mxu0
        %v651 = vadd.f32 %v548, %v650
        %v652 = vpop.f32.mrb[0].mxu0
        %653 = vmatprep.mubr.bf16.mxu0 0
        %654 = vmatmul.mubr.bf16.gmra.mrb[0].mxu0 %v583
        %v655 = vpop.f32.mrb[0].mxu0
        %v656 = vadd.f32 %v548, %v655
        %v657 = vpop.f32.mrb[0].mxu0
        %v658 = vpop.f32.mrb[0].mxu0
        %v659 = vadd.f32 %v548, %v658
        %v660 = vpop.f32.mrb[0].mxu0
        %661 = vmatprep.mubr.bf16.mxu0 0
        %662 = vmatmul.mubr.bf16.gmra.mrb[0].mxu0 %v586
        %v663 = vpop.f32.mrb[0].mxu0
        %v664 = vadd.f32 %v548, %v663
        %v665 = vpop.f32.mrb[0].mxu0
        %v666 = vpop.f32.mrb[0].mxu0
        %v667 = vadd.f32 %v548, %v666
        %v668 = vpop.f32.mrb[0].mxu0
        %669 = vmatprep.mubr.bf16.mxu0 0
        %670 = vmatmul.mubr.bf16.gmra.mrb[0].mxu0 %v589
        %v671 = vpop.f32.mrb[0].mxu0
        %v672 = vadd.f32 %v548, %v671
        %v673 = vpop.f32.mrb[0].mxu0
        %v674 = vpop.f32.mrb[0].mxu0
        %v675 = vadd.f32 %v548, %v674
        %v676 = vpop.f32.mrb[0].mxu0
        %677 = vmatprep.mubr.bf16.mxu0 0
        %678 = vmatmul.mubr.bf16.gmra.mrb[0].mxu0 %v592
        %v679 = vpop.f32.mrb[0].mxu0
        %v680 = vadd.f32 %v548, %v679
        %v681 = vpop.f32.mrb[0].mxu0
        %v682 = vpop.f32.mrb[0].mxu0
        %v683 = vadd.f32 %v548, %v682
        %v684 = vpop.f32.mrb[0].mxu0
        %685 = vmatprep.mubr.bf16.mxu0 0
        %686 = vmatmul.mubr.bf16.gmra.mrb[0].mxu0 %v595
        %v687 = vpop.f32.mrb[0].mxu0
        %v688 = vadd.f32 %v548, %v687
        %v689 = vpop.f32.mrb[0].mxu0
        %v690 = vpop.f32.mrb[0].mxu0
        %v691 = vadd.f32 %v548, %v690
        %v692 = vpop.f32.mrb[0].mxu0
        %693 = vdwg.mxu0
        %v694 = vpack.c.bf16 %v635, %v632
        %v695 = vpack.c.bf16 %v643, %v640
        %v696 = vpack.c.bf16 %v651, %v648
        %v697 = vpack.c.bf16 %v659, %v656
        %v698 = vpack.c.bf16 %v667, %v664
        %v699 = vpack.c.bf16 %v675, %v672
        %v700 = vpack.c.bf16 %v683, %v680
        %v701 = vpack.c.bf16 %v691, %v688
        %v702 = vld [vmem:[#allocation2] sm:$0x3]
        %v705 = vunpack.c.l.s4 1966171168
        %v706 = vunpack.c.0.s8 %v705
        %v707 = vlaneseq
        %v708 = vshrl.u32 %v707, 7
        %v709 = vsub.s32 %v706, %v708
        %v710 = vrot.slane %v702, %v709
        %v711 = vcombine.high %v710, %v710
        %v713 = vunpack.c.l.s4 1966171168
        %v714 = vunpack.c.0.s8 %v713
        %v715 = vlaneseq
        %v716 = vshrl.u32 %v715, 7
        %v717 = vsub.s32 %v714, %v716
        %v718 = vrot.slane %v710, %v717
        %v720 = vunpack.c.l.s4 1966171168
        %v721 = vunpack.c.0.s8 %v720
        %v722 = vlaneseq
        %v723 = vshrl.u32 %v722, 7
        %v724 = vsub.s32 %v721, %v723
        %v725 = vrot.slane %v711, %v724
        %vm726 = vcmask 15360
        %v728 = vsel %vm726, %v694, 0
        %v731 = vsel %vm726, %v695, 0
        %v734 = vsel %vm726, %v696, 0
        %v737 = vsel %vm726, %v697, 0
        %v740 = vsel %vm726, %v698, 0
        %v743 = vsel %vm726, %v699, 0
        %v746 = vsel %vm726, %v700, 0
        %v749 = vsel %vm726, %v701, 0
        %vm751 = vcmask 1040384
        %v753 = vsel %vm751, %v718, 0
        %v756 = vsel %vm751, %v725, 0
        %758 = vmatprep.subr.bf16.mxu0 %v756
        %759 = vmatpush1.bf16.msra.mxu0 %v753
        %760 = vmatprep.subr.bf16.mxu0 0
        %761 = vmatpush1.bf16.msra.mxu0 0
        %762 = vmatprep.subr.bf16.mxu0 0
        %763 = vmatpush1.bf16.msra.mxu0 0
        %764 = vmatprep.subr.bf16.mxu0 0
        %765 = vmatpush1.bf16.msra.mxu0 0
        %766 = vmatprep.subr.bf16.mxu0 0
        %767 = vmatpush1.bf16.msra.mxu0 0
        %768 = vmatprep.subr.bf16.mxu0 0
        %769 = vmatpush1.bf16.msra.mxu0 0
        %770 = vmatprep.subr.bf16.mxu0 0
        %771 = vmatpush1.bf16.msra.mxu0 0
        %772 = vmatprep.subr.bf16.mxu0 0
        %773 = vmatpush1.bf16.msra.mxu0 0
        %774 = vmatprep.subr.bf16.mxu0 0
        %775 = vmatpush1.bf16.msra.mxu0 0
        %776 = vmatprep.subr.bf16.mxu0 0
        %777 = vmatpush1.bf16.msra.mxu0 0
        %778 = vmatprep.subr.bf16.mxu0 0
        %779 = vmatpush1.bf16.msra.mxu0 0
        %780 = vmatprep.subr.bf16.mxu0 0
        %781 = vmatpush1.bf16.msra.mxu0 0
        %782 = vmatprep.subr.bf16.mxu0 0
        %783 = vmatpush1.bf16.msra.mxu0 0
        %784 = vmatprep.subr.bf16.mxu0 0
        %785 = vmatpush1.bf16.msra.mxu0 0
        %786 = vmatprep.subr.bf16.mxu0 0
        %787 = vmatpush1.bf16.msra.mxu0 0
        %788 = vmatprep.subr.bf16.mxu0 0
        %789 = vmatpush1.bf16.msra.mxu0 0
        %790 = vmatprep.mubr.bf16.mxu0 0
        %791 = vmatmul.mubr.bf16.gmra.mrb[0].mxu0 %v728
        %v792 = vpop.f32.mrb[0].mxu0
        %v793 = vadd.f32 0.0, %v792
        %v794 = vpop.f32.mrb[0].mxu0
        %v795 = vadd.f32 0.0, %v794
        %v796 = vpop.f32.mrb[0].mxu0
        %v797 = vadd.f32 0.0, %v796
        %v798 = vpop.f32.mrb[0].mxu0
        %v799 = vadd.f32 0.0, %v798
        %800 = vmatprep.mubr.bf16.mxu0 0
        %801 = vmatmul.mubr.bf16.gmra.mrb[0].mxu0 %v731
        %v802 = vpop.f32.mrb[0].mxu0
        %v803 = vadd.f32 0.0, %v802
        %v804 = vpop.f32.mrb[0].mxu0
        %v805 = vadd.f32 0.0, %v804
        %v806 = vpop.f32.mrb[0].mxu0
        %v807 = vadd.f32 0.0, %v806
        %v808 = vpop.f32.mrb[0].mxu0
        %v809 = vadd.f32 0.0, %v808
        %810 = vmatprep.mubr.bf16.mxu0 0
        %811 = vmatmul.mubr.bf16.gmra.mrb[0].mxu0 %v734
        %v812 = vpop.f32.mrb[0].mxu0
        %v813 = vadd.f32 0.0, %v812
        %v814 = vpop.f32.mrb[0].mxu0
        %v815 = vadd.f32 0.0, %v814
        %v816 = vpop.f32.mrb[0].mxu0
        %v817 = vadd.f32 0.0, %v816
        %v818 = vpop.f32.mrb[0].mxu0
        %v819 = vadd.f32 0.0, %v818
        %820 = vmatprep.mubr.bf16.mxu0 0
        %821 = vmatmul.mubr.bf16.gmra.mrb[0].mxu0 %v737
        %v822 = vpop.f32.mrb[0].mxu0
        %v823 = vadd.f32 0.0, %v822
        %v824 = vpop.f32.mrb[0].mxu0
        %v825 = vadd.f32 0.0, %v824
        %v826 = vpop.f32.mrb[0].mxu0
        %v827 = vadd.f32 0.0, %v826
        %v828 = vpop.f32.mrb[0].mxu0
        %v829 = vadd.f32 0.0, %v828
        %830 = vmatprep.mubr.bf16.mxu0 0
        %831 = vmatmul.mubr.bf16.gmra.mrb[0].mxu0 %v740
        %v832 = vpop.f32.mrb[0].mxu0
        %v833 = vadd.f32 0.0, %v832
        %v834 = vpop.f32.mrb[0].mxu0
        %v835 = vadd.f32 0.0, %v834
        %v836 = vpop.f32.mrb[0].mxu0
        %v837 = vadd.f32 0.0, %v836
        %v838 = vpop.f32.mrb[0].mxu0
        %v839 = vadd.f32 0.0, %v838
        %840 = vmatprep.mubr.bf16.mxu0 0
        %841 = vmatmul.mubr.bf16.gmra.mrb[0].mxu0 %v743
        %v842 = vpop.f32.mrb[0].mxu0
        %v843 = vadd.f32 0.0, %v842
        %v844 = vpop.f32.mrb[0].mxu0
        %v845 = vadd.f32 0.0, %v844
        %v846 = vpop.f32.mrb[0].mxu0
        %v847 = vadd.f32 0.0, %v846
        %v848 = vpop.f32.mrb[0].mxu0
        %v849 = vadd.f32 0.0, %v848
        %850 = vmatprep.mubr.bf16.mxu0 0
        %851 = vmatmul.mubr.bf16.gmra.mrb[0].mxu0 %v746
        %v852 = vpop.f32.mrb[0].mxu0
        %v853 = vadd.f32 0.0, %v852
        %v854 = vpop.f32.mrb[0].mxu0
        %v855 = vadd.f32 0.0, %v854
        %v856 = vpop.f32.mrb[0].mxu0
        %v857 = vadd.f32 0.0, %v856
        %v858 = vpop.f32.mrb[0].mxu0
        %v859 = vadd.f32 0.0, %v858
        %860 = vmatprep.mubr.bf16.mxu0 0
        %861 = vmatmul.mubr.bf16.gmra.mrb[0].mxu0 %v749
        %v862 = vpop.f32.mrb[0].mxu0
        %v863 = vadd.f32 0.0, %v862
        %v864 = vpop.f32.mrb[0].mxu0
        %v865 = vadd.f32 0.0, %v864
        %v866 = vpop.f32.mrb[0].mxu0
        %v867 = vadd.f32 0.0, %v866
        %v868 = vpop.f32.mrb[0].mxu0
        %v869 = vadd.f32 0.0, %v868
        %870 = vdwg.mxu0
        %v871 = vmax.f32 %v793, %v795
        %872 = vmax.xlane.f32.xlu0 %v871
        %v873 = vpop.xlane.xlu0 %872
        %v874 = vmax.f32 %v797, %v799
        %875 = vmax.xlane.f32.xlu0 %v874
        %v876 = vpop.xlane.xlu0 %875
        %v877 = vmax.f32 %v803, %v805
        %878 = vmax.xlane.f32.xlu0 %v877
        %v879 = vpop.xlane.xlu0 %878
        %v880 = vmax.f32 %v807, %v809
        %881 = vmax.xlane.f32.xlu0 %v880
        %v882 = vpop.xlane.xlu0 %881
        %v883 = vmax.f32 %v813, %v815
        %884 = vmax.xlane.f32.xlu0 %v883
        %v885 = vpop.xlane.xlu0 %884
        %v886 = vmax.f32 %v817, %v819
        %887 = vmax.xlane.f32.xlu0 %v886
        %v888 = vpop.xlane.xlu0 %887
        %v889 = vmax.f32 %v823, %v825
        %890 = vmax.xlane.f32.xlu0 %v889
        %v891 = vpop.xlane.xlu0 %890
        %v892 = vmax.f32 %v827, %v829
        %893 = vmax.xlane.f32.xlu0 %v892
        %v894 = vpop.xlane.xlu0 %893
        %v895 = vmax.f32 %v833, %v835
        %896 = vmax.xlane.f32.xlu0 %v895
        %v897 = vpop.xlane.xlu0 %896
        %v898 = vmax.f32 %v837, %v839
        %899 = vmax.xlane.f32.xlu0 %v898
        %v900 = vpop.xlane.xlu0 %899
        %v901 = vmax.f32 %v843, %v845
        %902 = vmax.xlane.f32.xlu0 %v901
        %v903 = vpop.xlane.xlu0 %902
        %v904 = vmax.f32 %v847, %v849
        %905 = vmax.xlane.f32.xlu0 %v904
        %v906 = vpop.xlane.xlu0 %905
        %v907 = vmax.f32 %v853, %v855
        %908 = vmax.xlane.f32.xlu0 %v907
        %v909 = vpop.xlane.xlu0 %908
        %v910 = vmax.f32 %v857, %v859
        %911 = vmax.xlane.f32.xlu0 %v910
        %v912 = vpop.xlane.xlu0 %911
        %v913 = vmax.f32 %v863, %v865
        %914 = vmax.xlane.f32.xlu0 %v913
        %v915 = vpop.xlane.xlu0 %914
        %v916 = vmax.f32 %v867, %v869
        %917 = vmax.xlane.f32.xlu0 %v916
        %v918 = vpop.xlane.xlu0 %917
        %v919 = vsub.f32 %v793, %v873
        %v920 = vsub.f32 %v795, %v873
        %v921 = vsub.f32 %v797, %v876
        %v922 = vsub.f32 %v799, %v876
        %v923 = vsub.f32 %v803, %v879
        %v924 = vsub.f32 %v805, %v879
        %v925 = vsub.f32 %v807, %v882
        %v926 = vsub.f32 %v809, %v882
        %v927 = vsub.f32 %v813, %v885
        %v928 = vsub.f32 %v815, %v885
        %v929 = vsub.f32 %v817, %v888
        %v930 = vsub.f32 %v819, %v888
        %v931 = vsub.f32 %v823, %v891
        %v932 = vsub.f32 %v825, %v891
        %v933 = vsub.f32 %v827, %v894
        %v934 = vsub.f32 %v829, %v894
        %v935 = vsub.f32 %v833, %v897
        %v936 = vsub.f32 %v835, %v897
        %v937 = vsub.f32 %v837, %v900
        %v938 = vsub.f32 %v839, %v900
        %v939 = vsub.f32 %v843, %v903
        %v940 = vsub.f32 %v845, %v903
        %v941 = vsub.f32 %v847, %v906
        %v942 = vsub.f32 %v849, %v906
        %v943 = vsub.f32 %v853, %v909
        %v944 = vsub.f32 %v855, %v909
        %v945 = vsub.f32 %v857, %v912
        %v946 = vsub.f32 %v859, %v912
        %v947 = vsub.f32 %v863, %v915
        %v948 = vsub.f32 %v865, %v915
        %v949 = vsub.f32 %v867, %v918
        %v950 = vsub.f32 %v869, %v918
        %v951 = vmul.f32 %v919, 1.442695
        %v952 = vpow.pop %v951
        %v953 = vmul.f32 %v920, 1.442695
        %v954 = vpow.pop %v953
        %v955 = vmul.f32 %v921, 1.442695
        %v956 = vpow.pop %v955
        %v957 = vmul.f32 %v922, 1.442695
        %v958 = vpow.pop %v957
        %v959 = vmul.f32 %v923, 1.442695
        %v960 = vpow.pop %v959
        %v961 = vmul.f32 %v924, 1.442695
        %v962 = vpow.pop %v961
        %v963 = vmul.f32 %v925, 1.442695
        %v964 = vpow.pop %v963
        %v965 = vmul.f32 %v926, 1.442695
        %v966 = vpow.pop %v965
        %v967 = vmul.f32 %v927, 1.442695
        %v968 = vpow.pop %v967
        %v969 = vmul.f32 %v928, 1.442695
        %v970 = vpow.pop %v969
        %v971 = vmul.f32 %v929, 1.442695
        %v972 = vpow.pop %v971
        %v973 = vmul.f32 %v930, 1.442695
        %v974 = vpow.pop %v973
        %v975 = vmul.f32 %v931, 1.442695
        %v976 = vpow.pop %v975
        %v977 = vmul.f32 %v932, 1.442695
        %v978 = vpow.pop %v977
        %v979 = vmul.f32 %v933, 1.442695
        %v980 = vpow.pop %v979
        %v981 = vmul.f32 %v934, 1.442695
        %v982 = vpow.pop %v981
        %v983 = vmul.f32 %v935, 1.442695
        %v984 = vpow.pop %v983
        %v985 = vmul.f32 %v936, 1.442695
        %v986 = vpow.pop %v985
        %v987 = vmul.f32 %v937, 1.442695
        %v988 = vpow.pop %v987
        %v989 = vmul.f32 %v938, 1.442695
        %v990 = vpow.pop %v989
        %v991 = vmul.f32 %v939, 1.442695
        %v992 = vpow.pop %v991
        %v993 = vmul.f32 %v940, 1.442695
        %v994 = vpow.pop %v993
        %v995 = vmul.f32 %v941, 1.442695
        %v996 = vpow.pop %v995
        %v997 = vmul.f32 %v942, 1.442695
        %v998 = vpow.pop %v997
        %v999 = vmul.f32 %v943, 1.442695
        %v1000 = vpow.pop %v999
        %v1001 = vmul.f32 %v944, 1.442695
        %v1002 = vpow.pop %v1001
        %v1003 = vmul.f32 %v945, 1.442695
        %v1004 = vpow.pop %v1003
        %v1005 = vmul.f32 %v946, 1.442695
        %v1006 = vpow.pop %v1005
        %v1007 = vmul.f32 %v947, 1.442695
        %v1008 = vpow.pop %v1007
        %v1009 = vmul.f32 %v948, 1.442695
        %v1010 = vpow.pop %v1009
        %v1011 = vmul.f32 %v949, 1.442695
        %v1012 = vpow.pop %v1011
        %v1013 = vmul.f32 %v950, 1.442695
        %v1014 = vpow.pop %v1013
        %v1015 = vadd.f32 %v952, %v954
        %1016 = vadd.xlane.f32.xlu0 %v1015
        %v1017 = vpop.xlane.xlu0 %1016
        %v1018 = vadd.f32 %v956, %v958
        %1019 = vadd.xlane.f32.xlu0 %v1018
        %v1020 = vpop.xlane.xlu0 %1019
        %v1021 = vadd.f32 %v960, %v962
        %1022 = vadd.xlane.f32.xlu0 %v1021
        %v1023 = vpop.xlane.xlu0 %1022
        %v1024 = vadd.f32 %v964, %v966
        %1025 = vadd.xlane.f32.xlu0 %v1024
        %v1026 = vpop.xlane.xlu0 %1025
        %v1027 = vadd.f32 %v968, %v970
        %1028 = vadd.xlane.f32.xlu0 %v1027
        %v1029 = vpop.xlane.xlu0 %1028
        %v1030 = vadd.f32 %v972, %v974
        %1031 = vadd.xlane.f32.xlu0 %v1030
        %v1032 = vpop.xlane.xlu0 %1031
        %v1033 = vadd.f32 %v976, %v978
        %1034 = vadd.xlane.f32.xlu0 %v1033
        %v1035 = vpop.xlane.xlu0 %1034
        %v1036 = vadd.f32 %v980, %v982
        %1037 = vadd.xlane.f32.xlu0 %v1036
        %v1038 = vpop.xlane.xlu0 %1037
        %v1039 = vadd.f32 %v984, %v986
        %1040 = vadd.xlane.f32.xlu0 %v1039
        %v1041 = vpop.xlane.xlu0 %1040
        %v1042 = vadd.f32 %v988, %v990
        %1043 = vadd.xlane.f32.xlu0 %v1042
        %v1044 = vpop.xlane.xlu0 %1043
        %v1045 = vadd.f32 %v992, %v994
        %1046 = vadd.xlane.f32.xlu0 %v1045
        %v1047 = vpop.xlane.xlu0 %1046
        %v1048 = vadd.f32 %v996, %v998
        %1049 = vadd.xlane.f32.xlu0 %v1048
        %v1050 = vpop.xlane.xlu0 %1049
        %v1051 = vadd.f32 %v1000, %v1002
        %1052 = vadd.xlane.f32.xlu0 %v1051
        %v1053 = vpop.xlane.xlu0 %1052
        %v1054 = vadd.f32 %v1004, %v1006
        %1055 = vadd.xlane.f32.xlu0 %v1054
        %v1056 = vpop.xlane.xlu0 %1055
        %v1057 = vadd.f32 %v1008, %v1010
        %1058 = vadd.xlane.f32.xlu0 %v1057
        %v1059 = vpop.xlane.xlu0 %1058
        %v1060 = vadd.f32 %v1012, %v1014
        %1061 = vadd.xlane.f32.xlu0 %v1060
        %v1062 = vpop.xlane.xlu0 %1061
        %v1063 = vrcp.pop %v1017
        %v1064 = vrcp.pop %v1020
        %v1065 = vrcp.pop %v1023
        %v1066 = vrcp.pop %v1026
        %v1067 = vrcp.pop %v1029
        %v1068 = vrcp.pop %v1032
        %v1069 = vrcp.pop %v1035
        %v1070 = vrcp.pop %v1038
        %v1071 = vrcp.pop %v1041
        %v1072 = vrcp.pop %v1044
        %v1073 = vrcp.pop %v1047
        %v1074 = vrcp.pop %v1050
        %v1075 = vrcp.pop %v1053
        %v1076 = vrcp.pop %v1056
        %v1077 = vrcp.pop %v1059
        %v1078 = vrcp.pop %v1062
        %v1079 = vmul.f32 %v952, %v1063
        %v1080 = vmul.f32 %v954, %v1063
        %v1081 = vmul.f32 %v956, %v1064
        %v1082 = vmul.f32 %v958, %v1064
        %v1083 = vmul.f32 %v960, %v1065
        %v1084 = vmul.f32 %v962, %v1065
        %v1085 = vmul.f32 %v964, %v1066
        %v1086 = vmul.f32 %v966, %v1066
        %v1087 = vmul.f32 %v968, %v1067
        %v1088 = vmul.f32 %v970, %v1067
        %v1089 = vmul.f32 %v972, %v1068
        %v1090 = vmul.f32 %v974, %v1068
        %v1091 = vmul.f32 %v976, %v1069
        %v1092 = vmul.f32 %v978, %v1069
        %v1093 = vmul.f32 %v980, %v1070
        %v1094 = vmul.f32 %v982, %v1070
        %v1095 = vmul.f32 %v984, %v1071
        %v1096 = vmul.f32 %v986, %v1071
        %v1097 = vmul.f32 %v988, %v1072
        %v1098 = vmul.f32 %v990, %v1072
        %v1099 = vmul.f32 %v992, %v1073
        %v1100 = vmul.f32 %v994, %v1073
        %v1101 = vmul.f32 %v996, %v1074
        %v1102 = vmul.f32 %v998, %v1074
        %v1103 = vmul.f32 %v1000, %v1075
        %v1104 = vmul.f32 %v1002, %v1075
        %v1105 = vmul.f32 %v1004, %v1076
        %v1106 = vmul.f32 %v1006, %v1076
        %v1107 = vmul.f32 %v1008, %v1077
        %v1108 = vmul.f32 %v1010, %v1077
        %v1109 = vmul.f32 %v1012, %v1078
        %v1110 = vmul.f32 %v1014, %v1078
        %v1111 = vpack.c.bf16 %v1081, %v1079
        %v1112 = vpack.c.bf16 %v1082, %v1080
        %v1113 = vpack.c.bf16 %v1085, %v1083
        %v1114 = vpack.c.bf16 %v1086, %v1084
        %v1115 = vpack.c.bf16 %v1089, %v1087
        %v1116 = vpack.c.bf16 %v1090, %v1088
        %v1117 = vpack.c.bf16 %v1093, %v1091
        %v1118 = vpack.c.bf16 %v1094, %v1092
        %v1119 = vpack.c.bf16 %v1097, %v1095
        %v1120 = vpack.c.bf16 %v1098, %v1096
        %v1121 = vpack.c.bf16 %v1101, %v1099
        %v1122 = vpack.c.bf16 %v1102, %v1100
        %v1123 = vpack.c.bf16 %v1105, %v1103
        %v1124 = vpack.c.bf16 %v1106, %v1104
        %v1125 = vpack.c.bf16 %v1109, %v1107
        %v1126 = vpack.c.bf16 %v1110, %v1108
        %v1127 = vld [vmem:[#allocation3] sm:$0xff]
        %v1128 = vld [vmem:[#allocation3 + $0x8] sm:$0xff]
        %1129 = vmatprep.subr.bf16.mxu0 %v1112
        %1130 = vmatpush1.bf16.xpose.msra.mxu0 %v1111
        %1131 = vmatprep.subr.bf16.mxu0 %v1114
        %1132 = vmatpush1.bf16.xpose.msra.mxu0 %v1113
        %1133 = vmatprep.subr.bf16.mxu0 %v1116
        %1134 = vmatpush1.bf16.xpose.msra.mxu0 %v1115
        %1135 = vmatprep.subr.bf16.mxu0 %v1118
        %1136 = vmatpush1.bf16.xpose.msra.mxu0 %v1117
        %1137 = vmatprep.subr.bf16.mxu0 %v1120
        %1138 = vmatpush1.bf16.xpose.msra.mxu0 %v1119
        %1139 = vmatprep.subr.bf16.mxu0 %v1122
        %1140 = vmatpush1.bf16.xpose.msra.mxu0 %v1121
        %1141 = vmatprep.subr.bf16.mxu0 %v1124
        %1142 = vmatpush1.bf16.xpose.msra.mxu0 %v1123
        %1143 = vmatprep.subr.bf16.mxu0 %v1126
        %1144 = vmatpush1.bf16.xpose.msra.mxu0 %v1125
        %1145 = vmatprep.subr.bf16.mxu0 0
        %1146 = vmatpush1.bf16.xpose.msra.mxu0 0
        %1147 = vmatprep.subr.bf16.mxu0 0
        %1148 = vmatpush1.bf16.xpose.msra.mxu0 0
        %1149 = vmatprep.subr.bf16.mxu0 0
        %1150 = vmatpush1.bf16.xpose.msra.mxu0 0
        %1151 = vmatprep.subr.bf16.mxu0 0
        %1152 = vmatpush1.bf16.xpose.msra.mxu0 0
        %1153 = vmatprep.subr.bf16.mxu0 0
        %1154 = vmatpush1.bf16.xpose.msra.mxu0 0
        %1155 = vmatprep.subr.bf16.mxu0 0
        %1156 = vmatpush1.bf16.xpose.msra.mxu0 0
        %1157 = vmatprep.subr.bf16.mxu0 0
        %1158 = vmatpush1.bf16.xpose.msra.mxu0 0
        %1159 = vmatprep.subr.bf16.mxu0 0
        %1160 = vmatpush1.bf16.xpose.msra.mxu0 0
        %1161 = vmatprep.mubr.bf16.mxu0 %v1128
        %1162 = vmatmul.mubr.bf16.gmra.mrb[0].mxu0 %v1127
        %v1163 = vpop.f32.mrb[0].mxu0
        %v1164 = vadd.f32 0.0, %v1163
        %v1165 = vpop.f32.mrb[0].mxu0
        %v1166 = vpop.f32.mrb[0].mxu0
        %v1167 = vadd.f32 0.0, %v1166
        %v1168 = vpop.f32.mrb[0].mxu0
        %1169 = vdwg.mxu0
        %s1170 = sld [smem:[#allocation4]]
        %v1171 = vstv %s1170
        %v1172 = vmul.f32 %v1171, %v1164
        %v1173 = vmul.f32 %v1171, %v1167
        %v1174 = vadd.f32 %v1172, %v538
        %v1175 = vadd.f32 %v1173, %v539
        %1176 = vst [vmem:[%s371] sm:$0xff] %v1174
        %1177 = vst [vmem:[%s371 + $0x8] sm:$0xff] %v1175
        %v1194 = vunpack.c.l.b16 %v1111
        %v1195 = vunpack.c.l.b16 %v1112
        %v1196 = vunpack.c.h.b16 %v1111
        %v1197 = vunpack.c.h.b16 %v1112
        %v1198 = vunpack.c.l.b16 %v1113
        %v1199 = vunpack.c.l.b16 %v1114
        %v1200 = vunpack.c.h.b16 %v1113
        %v1201 = vunpack.c.h.b16 %v1114
        %v1202 = vunpack.c.l.b16 %v1115
        %v1203 = vunpack.c.l.b16 %v1116
        %v1204 = vunpack.c.h.b16 %v1115
        %v1205 = vunpack.c.h.b16 %v1116
        %v1206 = vunpack.c.l.b16 %v1117
        %v1207 = vunpack.c.l.b16 %v1118
        %v1208 = vunpack.c.h.b16 %v1117
        %v1209 = vunpack.c.h.b16 %v1118
        %v1210 = vunpack.c.l.b16 %v1119
        %v1211 = vunpack.c.l.b16 %v1120
        %v1212 = vunpack.c.h.b16 %v1119
        %v1213 = vunpack.c.h.b16 %v1120
        %v1214 = vunpack.c.l.b16 %v1121
        %v1215 = vunpack.c.l.b16 %v1122
        %v1216 = vunpack.c.h.b16 %v1121
        %v1217 = vunpack.c.h.b16 %v1122
        %v1218 = vunpack.c.l.b16 %v1123
        %v1219 = vunpack.c.l.b16 %v1124
        %v1220 = vunpack.c.h.b16 %v1123
        %v1221 = vunpack.c.h.b16 %v1124
        %v1222 = vunpack.c.l.b16 %v1125
        %v1223 = vunpack.c.l.b16 %v1126
        %v1224 = vunpack.c.h.b16 %v1125
        %v1225 = vunpack.c.h.b16 %v1126
        %v1226 = vpack.c.b16 %v1195, %v1194
        %v1227 = vpack.c.b16 %v1197, %v1196
        %v1228 = vpack.c.b16 %v1199, %v1198
        %v1229 = vpack.c.b16 %v1201, %v1200
        %v1230 = vpack.c.b16 %v1203, %v1202
        %v1231 = vpack.c.b16 %v1205, %v1204
        %v1232 = vpack.c.b16 %v1207, %v1206
        %v1233 = vpack.c.b16 %v1209, %v1208
        %v1234 = vpack.c.b16 %v1211, %v1210
        %v1235 = vpack.c.b16 %v1213, %v1212
        %v1236 = vpack.c.b16 %v1215, %v1214
        %v1237 = vpack.c.b16 %v1217, %v1216
        %v1238 = vpack.c.b16 %v1219, %v1218
        %v1239 = vpack.c.b16 %v1221, %v1220
        %v1240 = vpack.c.b16 %v1223, %v1222
        %v1241 = vpack.c.b16 %v1225, %v1224
        %1258 = vst [vmem:[%s378] sm:$0xff] %v1226
        %1259 = vst [vmem:[%s378 + $0x8] sm:$0xff] %v1227
        %1260 = vst [vmem:[%s378 + $0x10] sm:$0xff] %v1228
        %1261 = vst [vmem:[%s378 + $0x18] sm:$0xff] %v1229
        %1262 = vst [vmem:[%s378 + $0x20] sm:$0xff] %v1230
        %1263 = vst [vmem:[%s378 + $0x28] sm:$0xff] %v1231
        %1264 = vst [vmem:[%s378 + $0x30] sm:$0xff] %v1232
        %1265 = vst [vmem:[%s378 + $0x38] sm:$0xff] %v1233
        %1266 = vst [vmem:[%s378 + $0x40] sm:$0xff] %v1234
        %1267 = vst [vmem:[%s378 + $0x48] sm:$0xff] %v1235
        %1268 = vst [vmem:[%s378 + $0x50] sm:$0xff] %v1236
        %1269 = vst [vmem:[%s378 + $0x58] sm:$0xff] %v1237
        %1270 = vst [vmem:[%s378 + $0x60] sm:$0xff] %v1238
        %1271 = vst [vmem:[%s378 + $0x68] sm:$0xff] %v1239
        %1272 = vst [vmem:[%s378 + $0x70] sm:$0xff] %v1240
        %1273 = vst [vmem:[%s378 + $0x78] sm:$0xff] %v1241
        %s1274 = sand.u32 %s226, 1
        %s1275 = scalar_lea.sflag [#allocation7], %s1274
        %s1276 = sand.u32 %s226, 1
        %s1277 = smul.addr %s1276, 16
        %s1278 = scalar_lea.vmem [#allocation8], %s1277
        %s1279 = sand.u32 %s254, 1
        %s1280 = scalar_lea.sflag [#allocation10], %s1279
        %s1281 = sand.u32 %s254, 1
        %s1282 = smul.addr %s1281, 128
        %s1283 = scalar_lea.vmem [#allocation9], %s1282
        // Predicated region
        $region61: #{tpu_custom_call.1} parent=51 // pred_check
          %p1284 = pneg %p236
        $region62: #{tpu_custom_call.1} parent=51 // pred_check_branch
          %1286 = sbr.rel (%p1284) target = $region64
        $region63: #{tpu_custom_call.1} parent=51 // pred_region
          %s1288 = ssub.s32 256, 256
          %1289 = vsyncadd %s1275, %s1288
          %s1290 = smul.addr %s35, 4
          %s1291 = sadd.s32 %s36, %s1290
          %s1292 = smul.addr %s1291, 128
          %s1293 = scalar_lea.hbm %s8, %s1292
          %s1294 = sshll.u32 %s1278, 4
          %s1295 = int_to_ptr.vmem [resolvable:$true] %s1294
          %1300 = dma.vmem_to_hbm [thread:$0]  %s1295, 256, %s1293, %s1275, 128, 256, 8
        $region64: #{tpu_custom_call.1} parent=51 // pred_fallthru
          _
        // Predicated region
        $region65: #{tpu_custom_call.1} parent=51 // pred_check
          %p1301 = pneg %p264
        $region66: #{tpu_custom_call.1} parent=51 // pred_check_branch
          %1303 = sbr.rel (%p1301) target = $region68
        $region67: #{tpu_custom_call.1} parent=51 // pred_region
          %s1304 = smul.u32 16, %s36
          %s1306 = ssub.s32 2048, 2048
          %1307 = vsyncadd %s1280, %s1306
          %s1308 = smul.addr %s1304, 2
          %s1309 = smul.addr %s35, 64
          %s1310 = sadd.s32 %s1308, %s1309
          %s1311 = smul.addr %s1310, 64
          %s1312 = scalar_lea.hbm %s9, %s1311
          %s1313 = sshll.u32 %s1283, 4
          %s1314 = int_to_ptr.vmem [resolvable:$true] %s1313
          %1319 = dma.vmem_to_hbm [thread:$0]  %s1314, 2048, %s1312, %s1280, 128, 128, 8
        $region68: #{tpu_custom_call.1} parent=51 // pred_fallthru
          _
      $region52: #{tpu_custom_call.1} parent=5 // pred_fallthru
        _
      %p1320 = scmp.le.s32.totalorder 2, %s26
      // Predicated region
      $region69: #{tpu_custom_call.1} parent=5 // pred_check
        %p1321 = pneg %p1320
      $region70: #{tpu_custom_call.1} parent=5 // pred_check_branch
        %1323 = sbr.rel (%p1321) target = $region72
      $region71: #{tpu_custom_call.1} parent=5 // pred_region
        %s1324 = ssub.s32 %s26, 2
        // Predicated region
        $region73: #{tpu_custom_call.1} parent=71 // pred_check
          %p1325 = pneg %p242
        $region74: #{tpu_custom_call.1} parent=71 // pred_check_branch
          %1327 = sbr.rel (%p1325) target = $region76
        $region75: #{tpu_custom_call.1} parent=71 // pred_region
          %s1328 = sand.u32 %s227, 1
          %s1329 = scalar_lea.sflag [#allocation7], %s1328
          %s1330 = sand.u32 %s227, 1
          %s1331 = smul.addr %s1330, 16
          %s1332 = scalar_lea.vmem [#allocation8], %s1331
          %1333 = dma.done %s1329, 256
        $region76: #{tpu_custom_call.1} parent=71 // pred_fallthru
          _
        // Predicated region
        $region77: #{tpu_custom_call.1} parent=71 // pred_check
          %p1334 = pneg %p270
        $region78: #{tpu_custom_call.1} parent=71 // pred_check_branch
          %1336 = sbr.rel (%p1334) target = $region80
        $region79: #{tpu_custom_call.1} parent=71 // pred_region
          %s1337 = sand.u32 %s255, 1
          %s1338 = scalar_lea.sflag [#allocation10], %s1337
          %s1339 = sand.u32 %s255, 1
          %s1340 = smul.addr %s1339, 128
          %s1341 = scalar_lea.vmem [#allocation9], %s1340
          %1342 = dma.done %s1338, 2048
        $region80: #{tpu_custom_call.1} parent=71 // pred_fallthru
          _
      $region72: #{tpu_custom_call.1} parent=5 // pred_fallthru
        _
    $region6: #{tpu_custom_call.1} parent=1 // loop_footer
      %s30 = sadd.s32 1, %s26
    $region7: #{tpu_custom_call.1} parent=1 // loop_footer_branch
      %25 = sbr.rel target = $region3
    $region8: #{tpu_custom_call.1} parent=1 // loop_exit
      _
    %1343 = vsyncpa [#allocation6], 1
    %s1344 = scalar_lea.sflag [#allocation6], 1
    %1345 = vsyncpa %s1344, 1
    %1346 = vsyncpa [#allocation7], 1
    %s1347 = scalar_lea.sflag [#allocation7], 1
    %1348 = vsyncpa %s1347, 1
    %1349 = vsyncpa [#allocation10], 1
    %s1350 = scalar_lea.sflag [#allocation10], 1
    %1351 = vsyncpa %s1350, 1

</llo_original>
